<compile_context>
chip_gen: v6e
topology: v6e:2x2x1
jax: 0.10.0
libtpu: 0.0.40
codegen_flags: <defaults>
</compile_context>

<pallas_src>
import functools

import jax
import jax.numpy as jnp
from jax.experimental import pallas as pl
from jax.experimental.pallas import tpu as pltpu


def _fcn_head_kernel(x_ref, w1_ref, b1_ref, w2_ref, b2_ref, o_ref, *,
                     rows_out, wp):
    # x_ref : (1, rows_in, Cin)   bf16, flattened halo'd row tile (padded width)
    # w1_ref: (9, Cin, Cmid)      bf16, conv1 weight with BN scale folded in
    # b1_ref: (1, Cmid)           f32, folded BN bias
    # w2_ref: (Cmid, Coutp)       bf16, 1x1 conv weight (lane padded)
    # b2_ref: (1, Coutp)          f32, conv2 bias (lane padded)
    # o_ref : (1, rows_out, Coutp)
    x = x_ref[0]                                            # (rows_in, Cin)
    cmid = w1_ref.shape[-1]

    # 3x3 conv as 9 shifted matmuls over Cin, accumulated in f32.
    acc = jnp.zeros((rows_out, cmid), jnp.float32)
    for ki in range(3):
        for kj in range(3):
            shift = ki * wp + kj
            lhs = x[shift:shift + rows_out, :]              # (rows_out, Cin)
            acc = acc + jnp.dot(lhs, w1_ref[ki * 3 + kj],
                                preferred_element_type=jnp.float32)

    # Folded BN bias + ReLU.  Dropout(0.1) is identity in eval mode.
    hidden = jnp.maximum(acc + b1_ref[...], 0.0)

    # 1x1 conv (+ bias): bf16 operands on the MXU, f32 accumulation.
    y = jnp.dot(hidden.astype(jnp.bfloat16), w2_ref[...],
                preferred_element_type=jnp.float32) + b2_ref[...]
    o_ref[0] = y.astype(o_ref.dtype)


def _pick_row_tile(n, h, w):
    # Target ~512 output rows per grid step; prefer >= 4 grid steps when H allows.
    th = max(1, min(h, 512 // max(w, 1)))
    while n * (-(-h // th)) < 4 and th > 1:
        th = max(1, th // 2)
    return th


@functools.partial(jax.jit, static_argnames=("eps",))
def fcn_head(x_nchw, w1, gamma, beta, run_mean, run_var, w2, b2, eps=1e-5):
    """Fused eval-mode _FCNHead forward.

    x_nchw: (N, Cin, H, W); w1: (Cmid, Cin, 3, 3); w2: (Cout, Cmid, 1, 1).
    """
    n, cin, h, w = x_nchw.shape
    cmid = w1.shape[0]
    cout = w2.shape[0]
    coutp = -(-cout // 128) * 128          # lane-dense output channel padding
    wp = w + 2                             # padded width

    th = _pick_row_tile(n, h, w)
    t = -(-h // th)
    hp = t * th

    rows_out = th * wp                     # output rows per tile (incl. 2 garbage cols/row)
    tail = 8                               # slack so the largest tap shift stays in-bounds
    rows_in = (th + 2) * wp + tail

    # NCHW -> NHWC in bf16; spatial zero pad (1 halo each side, H padded to T*th).
    x_nhwc = jnp.transpose(x_nchw, (0, 2, 3, 1)).astype(jnp.bfloat16)
    x_pad = jnp.pad(x_nhwc, ((0, 0), (1, 1 + hp - h), (1, 1), (0, 0)))

    # Overlapping halo'd row tiles, flattened over (rows, width): (N*T, rows_in, Cin).
    row_idx = (jnp.arange(t) * th)[:, None] + jnp.arange(th + 2)[None, :]
    x_tiles = x_pad[:, row_idx]                                   # (N, T, th+2, Wp, Cin)
    x_tiles = x_tiles.reshape(n * t, (th + 2) * wp, cin)
    x_tiles = jnp.pad(x_tiles, ((0, 0), (0, tail), (0, 0)))

    # Fold eval-mode BN into conv1: scale into the weights, shift as a bias.
    scale = gamma / jnp.sqrt(run_var + eps)
    b1 = (beta - run_mean * scale).reshape(1, cmid).astype(jnp.float32)
    w1_taps = jnp.transpose(w1, (2, 3, 1, 0)).reshape(9, cin, cmid)
    w1_taps = (w1_taps * scale[None, None, :]).astype(jnp.bfloat16)

    # 1x1 conv weight/bias, zero padded to lane-dense Coutp.
    w2_mat = jnp.transpose(w2.reshape(cout, cmid), (1, 0))
    w2_mat = jnp.pad(w2_mat, ((0, 0), (0, coutp - cout))).astype(jnp.bfloat16)
    b2_row = jnp.pad(b2, (0, coutp - cout)).reshape(1, coutp).astype(jnp.float32)

    out_itemsize = x_nchw.dtype.itemsize
    cost = pl.CostEstimate(
        flops=2 * n * t * rows_out * (9 * cin * cmid + cmid * coutp),
        transcendentals=0,
        bytes_accessed=(n * t * rows_in * cin * 2
                        + 9 * cin * cmid * 2 + cmid * coutp * 2
                        + (cmid + coutp) * 4
                        + n * t * rows_out * coutp * out_itemsize),
    )

    kernel = functools.partial(_fcn_head_kernel, rows_out=rows_out, wp=wp)
    out = pl.pallas_call(
        kernel,
        out_shape=jax.ShapeDtypeStruct((n * t, rows_out, coutp), x_nchw.dtype),
        grid_spec=pltpu.PrefetchScalarGridSpec(
            num_scalar_prefetch=0,
            grid=(n * t,),
            in_specs=[
                pl.BlockSpec((1, rows_in, cin), lambda i: (i, 0, 0)),
                pl.BlockSpec((9, cin, cmid), lambda i: (0, 0, 0)),
                pl.BlockSpec((1, cmid), lambda i: (0, 0)),
                pl.BlockSpec((cmid, coutp), lambda i: (0, 0)),
                pl.BlockSpec((1, coutp), lambda i: (0, 0)),
            ],
            out_specs=pl.BlockSpec((1, rows_out, coutp), lambda i: (i, 0, 0)),
        ),
        compiler_params=pltpu.CompilerParams(
            dimension_semantics=("parallel",),
            vmem_limit_bytes=32 * 1024 * 1024,
        ),
        cost_estimate=cost,
    )(x_tiles, w1_taps, b1, w2_mat, b2_row)

    # (N*T, th*Wp, Coutp) -> (N, Hp, Wp, Coutp) -> crop garbage/padding -> NCHW.
    out = out.reshape(n, t * th, wp, coutp)[:, :h, :w, :cout]
    return jnp.transpose(out, (0, 3, 1, 2))


def _reference(x, w1, gamma, beta, run_mean, run_var, w2, b2, eps=1e-5):
    # Pure-JAX reference with the same cast points (bf16 operands, f32 accum).
    scale = gamma / jnp.sqrt(run_var + eps)
    b1 = beta - run_mean * scale
    w1f = (w1 * scale[:, None, None, None]).astype(jnp.bfloat16)
    y = jax.lax.conv_general_dilated(
        x.astype(jnp.bfloat16), w1f,
        window_strides=(1, 1), padding=((1, 1), (1, 1)),
        dimension_numbers=("NCHW", "OIHW", "NCHW"),
        preferred_element_type=jnp.float32)
    y = jnp.maximum(y + b1[None, :, None, None], 0.0)      # BN bias + ReLU
    yb = y.astype(jnp.bfloat16)                             # Dropout: identity (eval)
    w2b = w2.reshape(w2.shape[0], w2.shape[1]).astype(jnp.bfloat16)
    out = jnp.einsum("nchw,oc->nohw", yb, w2b, preferred_element_type=jnp.float32)
    return out + b2[None, :, None, None]


if __name__ == "__main__":
    key = jax.random.PRNGKey(0)
    ks = jax.random.split(key, 8)

    # _FCNHead(in_channels=32, channels=8) -> inter_channels = 32 // 4 = 8
    n, in_ch, h, w = 2, 32, 16, 16
    inter_ch = in_ch // 4
    out_ch = 8

    x = jax.random.normal(ks[0], (n, in_ch, h, w), dtype=jnp.float32)
    w1 = jax.random.normal(ks[1], (inter_ch, in_ch, 3, 3), dtype=jnp.float32) * 0.1
    gamma = 1.0 + 0.1 * jax.random.normal(ks[2], (inter_ch,), dtype=jnp.float32)
    beta = 0.1 * jax.random.normal(ks[3], (inter_ch,), dtype=jnp.float32)
    run_mean = 0.1 * jax.random.normal(ks[4], (inter_ch,), dtype=jnp.float32)
    run_var = jnp.abs(1.0 + 0.1 * jax.random.normal(ks[5], (inter_ch,), dtype=jnp.float32))
    w2 = jax.random.normal(ks[6], (out_ch, inter_ch, 1, 1), dtype=jnp.float32) * 0.1
    b2 = 0.1 * jax.random.normal(ks[7], (out_ch,), dtype=jnp.float32)

    out = fcn_head(x, w1, gamma, beta, run_mean, run_var, w2, b2)
    out = jax.block_until_ready(out)

    ref = _reference(x, w1, gamma, beta, run_mean, run_var, w2, b2)
    assert out.shape == (n, out_ch, h, w), out.shape
    max_err = float(jnp.max(jnp.abs(out - ref)))
    assert jnp.allclose(out, ref, atol=2e-2, rtol=2e-2), max_err
    print("KERNEL_OK")
</pallas_src>

<mosaic_0001>
module attributes {stable_mosaic.version = 11 : i64} {
  func.func @_fcn_head_kernel(%arg0: i32, %arg1: memref<1x188x32xbf16, #tpu.memory_space<vmem>>, %arg2: memref<9x32x8xbf16, #tpu.memory_space<vmem>>, %arg3: memref<1x8xf32, #tpu.memory_space<vmem>>, %arg4: memref<8x128xbf16, #tpu.memory_space<vmem>>, %arg5: memref<1x128xf32, #tpu.memory_space<vmem>>, %arg6: memref<1x144x128xf32, #tpu.memory_space<vmem>>) attributes {dimension_semantics = [#tpu.dimension_semantics<parallel>], iteration_bounds = array<i64: 4>, scalar_prefetch = 0 : i64, scratch_operands = 0 : i64, tpu.core_type = #tpu.core_type<tc>, window_params = [{transform_indices = @transform_0, window_bounds = array<i64: 1, 188, 32>}, {pipeline_mode = #tpu.pipeline_mode<synchronous>, transform_indices = @transform_1, window_bounds = array<i64: 9, 32, 8>}, {pipeline_mode = #tpu.pipeline_mode<synchronous>, transform_indices = @transform_2, window_bounds = array<i64: 1, 8>}, {pipeline_mode = #tpu.pipeline_mode<synchronous>, transform_indices = @transform_3, window_bounds = array<i64: 8, 128>}, {pipeline_mode = #tpu.pipeline_mode<synchronous>, transform_indices = @transform_4, window_bounds = array<i64: 1, 128>}, {transform_indices = @transform_5, window_bounds = array<i64: 1, 144, 128>}]} {
    %c0 = arith.constant 0 : index
    %c0_0 = arith.constant 0 : index
    %c0_1 = arith.constant 0 : index
    %0 = vector.load %arg1[%c0, %c0_0, %c0_1] : memref<1x188x32xbf16, #tpu.memory_space<vmem>>, vector<1x188x32xbf16>
    %1 = vector.shape_cast %0 : vector<1x188x32xbf16> to vector<188x32xbf16>
    %cst = arith.constant 0.000000e+00 : f32
    %2 = vector.broadcast %cst : f32 to vector<144x8xf32>
    %3 = vector.extract_strided_slice %1 {offsets = [0, 0], sizes = [144, 32], strides = [1, 1]} : vector<188x32xbf16> to vector<144x32xbf16>
    %c0_2 = arith.constant 0 : index
    %c0_3 = arith.constant 0 : index
    %c0_4 = arith.constant 0 : index
    %4 = vector.load %arg2[%c0_2, %c0_3, %c0_4] : memref<9x32x8xbf16, #tpu.memory_space<vmem>>, vector<1x32x8xbf16>
    %5 = vector.shape_cast %4 : vector<1x32x8xbf16> to vector<32x8xbf16>
    %cst_5 = arith.constant dense<0.000000e+00> : vector<144x8xf32>
    %6 = tpu.matmul %3, %5, %cst_5 {dimension_numbers = #tpu.dot_dimension_numbers<[1], [0], [0], [1], [0, 0, 1, 1], [], []>} : vector<144x32xbf16>, vector<32x8xbf16>, vector<144x8xf32> -> vector<144x8xf32>
    %7 = arith.addf %2, %6 : vector<144x8xf32>
    %8 = vector.extract_strided_slice %1 {offsets = [1, 0], sizes = [144, 32], strides = [1, 1]} : vector<188x32xbf16> to vector<144x32xbf16>
    %c1 = arith.constant 1 : index
    %c0_6 = arith.constant 0 : index
    %c0_7 = arith.constant 0 : index
    %9 = vector.load %arg2[%c1, %c0_6, %c0_7] : memref<9x32x8xbf16, #tpu.memory_space<vmem>>, vector<1x32x8xbf16>
    %10 = vector.shape_cast %9 : vector<1x32x8xbf16> to vector<32x8xbf16>
    %cst_8 = arith.constant dense<0.000000e+00> : vector<144x8xf32>
    %11 = tpu.matmul %8, %10, %cst_8 {dimension_numbers = #tpu.dot_dimension_numbers<[1], [0], [0], [1], [0, 0, 1, 1], [], []>} : vector<144x32xbf16>, vector<32x8xbf16>, vector<144x8xf32> -> vector<144x8xf32>
    %12 = arith.addf %7, %11 : vector<144x8xf32>
    %13 = vector.extract_strided_slice %1 {offsets = [2, 0], sizes = [144, 32], strides = [1, 1]} : vector<188x32xbf16> to vector<144x32xbf16>
    %c2 = arith.constant 2 : index
    %c0_9 = arith.constant 0 : index
    %c0_10 = arith.constant 0 : index
    %14 = vector.load %arg2[%c2, %c0_9, %c0_10] : memref<9x32x8xbf16, #tpu.memory_space<vmem>>, vector<1x32x8xbf16>
    %15 = vector.shape_cast %14 : vector<1x32x8xbf16> to vector<32x8xbf16>
    %cst_11 = arith.constant dense<0.000000e+00> : vector<144x8xf32>
    %16 = tpu.matmul %13, %15, %cst_11 {dimension_numbers = #tpu.dot_dimension_numbers<[1], [0], [0], [1], [0, 0, 1, 1], [], []>} : vector<144x32xbf16>, vector<32x8xbf16>, vector<144x8xf32> -> vector<144x8xf32>
    %17 = arith.addf %12, %16 : vector<144x8xf32>
    %18 = vector.extract_strided_slice %1 {offsets = [18, 0], sizes = [144, 32], strides = [1, 1]} : vector<188x32xbf16> to vector<144x32xbf16>
    %c3 = arith.constant 3 : index
    %c0_12 = arith.constant 0 : index
    %c0_13 = arith.constant 0 : index
    %19 = vector.load %arg2[%c3, %c0_12, %c0_13] : memref<9x32x8xbf16, #tpu.memory_space<vmem>>, vector<1x32x8xbf16>
    %20 = vector.shape_cast %19 : vector<1x32x8xbf16> to vector<32x8xbf16>
    %cst_14 = arith.constant dense<0.000000e+00> : vector<144x8xf32>
    %21 = tpu.matmul %18, %20, %cst_14 {dimension_numbers = #tpu.dot_dimension_numbers<[1], [0], [0], [1], [0, 0, 1, 1], [], []>} : vector<144x32xbf16>, vector<32x8xbf16>, vector<144x8xf32> -> vector<144x8xf32>
    %22 = arith.addf %17, %21 : vector<144x8xf32>
    %23 = vector.extract_strided_slice %1 {offsets = [19, 0], sizes = [144, 32], strides = [1, 1]} : vector<188x32xbf16> to vector<144x32xbf16>
    %c4 = arith.constant 4 : index
    %c0_15 = arith.constant 0 : index
    %c0_16 = arith.constant 0 : index
    %24 = vector.load %arg2[%c4, %c0_15, %c0_16] : memref<9x32x8xbf16, #tpu.memory_space<vmem>>, vector<1x32x8xbf16>
    %25 = vector.shape_cast %24 : vector<1x32x8xbf16> to vector<32x8xbf16>
    %cst_17 = arith.constant dense<0.000000e+00> : vector<144x8xf32>
    %26 = tpu.matmul %23, %25, %cst_17 {dimension_numbers = #tpu.dot_dimension_numbers<[1], [0], [0], [1], [0, 0, 1, 1], [], []>} : vector<144x32xbf16>, vector<32x8xbf16>, vector<144x8xf32> -> vector<144x8xf32>
    %27 = arith.addf %22, %26 : vector<144x8xf32>
    %28 = vector.extract_strided_slice %1 {offsets = [20, 0], sizes = [144, 32], strides = [1, 1]} : vector<188x32xbf16> to vector<144x32xbf16>
    %c5 = arith.constant 5 : index
    %c0_18 = arith.constant 0 : index
    %c0_19 = arith.constant 0 : index
    %29 = vector.load %arg2[%c5, %c0_18, %c0_19] : memref<9x32x8xbf16, #tpu.memory_space<vmem>>, vector<1x32x8xbf16>
    %30 = vector.shape_cast %29 : vector<1x32x8xbf16> to vector<32x8xbf16>
    %cst_20 = arith.constant dense<0.000000e+00> : vector<144x8xf32>
    %31 = tpu.matmul %28, %30, %cst_20 {dimension_numbers = #tpu.dot_dimension_numbers<[1], [0], [0], [1], [0, 0, 1, 1], [], []>} : vector<144x32xbf16>, vector<32x8xbf16>, vector<144x8xf32> -> vector<144x8xf32>
    %32 = arith.addf %27, %31 : vector<144x8xf32>
    %33 = vector.extract_strided_slice %1 {offsets = [36, 0], sizes = [144, 32], strides = [1, 1]} : vector<188x32xbf16> to vector<144x32xbf16>
    %c6 = arith.constant 6 : index
    %c0_21 = arith.constant 0 : index
    %c0_22 = arith.constant 0 : index
    %34 = vector.load %arg2[%c6, %c0_21, %c0_22] : memref<9x32x8xbf16, #tpu.memory_space<vmem>>, vector<1x32x8xbf16>
    %35 = vector.shape_cast %34 : vector<1x32x8xbf16> to vector<32x8xbf16>
    %cst_23 = arith.constant dense<0.000000e+00> : vector<144x8xf32>
    %36 = tpu.matmul %33, %35, %cst_23 {dimension_numbers = #tpu.dot_dimension_numbers<[1], [0], [0], [1], [0, 0, 1, 1], [], []>} : vector<144x32xbf16>, vector<32x8xbf16>, vector<144x8xf32> -> vector<144x8xf32>
    %37 = arith.addf %32, %36 : vector<144x8xf32>
    %38 = vector.extract_strided_slice %1 {offsets = [37, 0], sizes = [144, 32], strides = [1, 1]} : vector<188x32xbf16> to vector<144x32xbf16>
    %c7 = arith.constant 7 : index
    %c0_24 = arith.constant 0 : index
    %c0_25 = arith.constant 0 : index
    %39 = vector.load %arg2[%c7, %c0_24, %c0_25] : memref<9x32x8xbf16, #tpu.memory_space<vmem>>, vector<1x32x8xbf16>
    %40 = vector.shape_cast %39 : vector<1x32x8xbf16> to vector<32x8xbf16>
    %cst_26 = arith.constant dense<0.000000e+00> : vector<144x8xf32>
    %41 = tpu.matmul %38, %40, %cst_26 {dimension_numbers = #tpu.dot_dimension_numbers<[1], [0], [0], [1], [0, 0, 1, 1], [], []>} : vector<144x32xbf16>, vector<32x8xbf16>, vector<144x8xf32> -> vector<144x8xf32>
    %42 = arith.addf %37, %41 : vector<144x8xf32>
    %43 = vector.extract_strided_slice %1 {offsets = [38, 0], sizes = [144, 32], strides = [1, 1]} : vector<188x32xbf16> to vector<144x32xbf16>
    %c8 = arith.constant 8 : index
    %c0_27 = arith.constant 0 : index
    %c0_28 = arith.constant 0 : index
    %44 = vector.load %arg2[%c8, %c0_27, %c0_28] : memref<9x32x8xbf16, #tpu.memory_space<vmem>>, vector<1x32x8xbf16>
    %45 = vector.shape_cast %44 : vector<1x32x8xbf16> to vector<32x8xbf16>
    %cst_29 = arith.constant dense<0.000000e+00> : vector<144x8xf32>
    %46 = tpu.matmul %43, %45, %cst_29 {dimension_numbers = #tpu.dot_dimension_numbers<[1], [0], [0], [1], [0, 0, 1, 1], [], []>} : vector<144x32xbf16>, vector<32x8xbf16>, vector<144x8xf32> -> vector<144x8xf32>
    %47 = arith.addf %42, %46 : vector<144x8xf32>
    %c0_30 = arith.constant 0 : index
    %c0_31 = arith.constant 0 : index
    %48 = vector.load %arg3[%c0_30, %c0_31] : memref<1x8xf32, #tpu.memory_space<vmem>>, vector<1x8xf32>
    %49 = vector.broadcast %48 : vector<1x8xf32> to vector<144x8xf32>
    %50 = arith.addf %47, %49 : vector<144x8xf32>
    %cst_32 = arith.constant 0.000000e+00 : f32
    %51 = vector.broadcast %cst_32 : f32 to vector<144x8xf32>
    %52 = arith.maximumf %50, %51 : vector<144x8xf32>
    %53 = arith.truncf %52 : vector<144x8xf32> to vector<144x8xbf16>
    %c0_33 = arith.constant 0 : index
    %c0_34 = arith.constant 0 : index
    %54 = vector.load %arg4[%c0_33, %c0_34] : memref<8x128xbf16, #tpu.memory_space<vmem>>, vector<8x128xbf16>
    %cst_35 = arith.constant dense<0.000000e+00> : vector<144x128xf32>
    %55 = tpu.matmul %53, %54, %cst_35 {dimension_numbers = #tpu.dot_dimension_numbers<[1], [0], [0], [1], [0, 0, 1, 1], [], []>} : vector<144x8xbf16>, vector<8x128xbf16>, vector<144x128xf32> -> vector<144x128xf32>
    %c0_36 = arith.constant 0 : index
    %c0_37 = arith.constant 0 : index
    %56 = vector.load %arg5[%c0_36, %c0_37] : memref<1x128xf32, #tpu.memory_space<vmem>>, vector<1x128xf32>
    %57 = vector.broadcast %56 : vector<1x128xf32> to vector<144x128xf32>
    %58 = arith.addf %55, %57 : vector<144x128xf32>
    %c0_38 = arith.constant 0 : index
    %c0_39 = arith.constant 0 : index
    %c0_40 = arith.constant 0 : index
    %59 = vector.load %arg6[%c0_38, %c0_39, %c0_40] : memref<1x144x128xf32, #tpu.memory_space<vmem>>, vector<1x144x128xf32>
    %60 = vector.shape_cast %59 : vector<1x144x128xf32> to vector<144x128xf32>
    %61 = vector.shape_cast %58 : vector<144x128xf32> to vector<1x144x128xf32>
    tpu.vector_store %arg6[%c0_38, %c0_39, %c0_40], %61 {strides = array<i32>} : memref<1x144x128xf32, #tpu.memory_space<vmem>>, vector<1x144x128xf32>,
    return
  }
  func.func @transform_0(%arg0: i32) -> (i32, i32, i32) {
    %c0_i32 = arith.constant 0 : i32
    %c0_i32_0 = arith.constant 0 : i32
    %c0_i32_1 = arith.constant 0 : i32
    return %arg0, %c0_i32, %c0_i32_0 : i32, i32, i32
  }
  func.func @transform_1(%arg0: i32) -> (i32, i32, i32) {
    %c0_i32 = arith.constant 0 : i32
    %c0_i32_0 = arith.constant 0 : i32
    %c0_i32_1 = arith.constant 0 : i32
    %c0_i32_2 = arith.constant 0 : i32
    return %c0_i32, %c0_i32_0, %c0_i32_1 : i32, i32, i32
  }
  func.func @transform_2(%arg0: i32) -> (i32, i32) {
    %c0_i32 = arith.constant 0 : i32
    %c0_i32_0 = arith.constant 0 : i32
    %c0_i32_1 = arith.constant 0 : i32
    return %c0_i32, %c0_i32_0 : i32, i32
  }
  func.func @transform_3(%arg0: i32) -> (i32, i32) {
    %c0_i32 = arith.constant 0 : i32
    %c0_i32_0 = arith.constant 0 : i32
    %c0_i32_1 = arith.constant 0 : i32
    return %c0_i32, %c0_i32_0 : i32, i32
  }
  func.func @transform_4(%arg0: i32) -> (i32, i32) {
    %c0_i32 = arith.constant 0 : i32
    %c0_i32_0 = arith.constant 0 : i32
    %c0_i32_1 = arith.constant 0 : i32
    return %c0_i32, %c0_i32_0 : i32, i32
  }
  func.func @transform_5(%arg0: i32) -> (i32, i32, i32) {
    %c0_i32 = arith.constant 0 : i32
    %c0_i32_0 = arith.constant 0 : i32
    %c0_i32_1 = arith.constant 0 : i32
    return %arg0, %c0_i32, %c0_i32_0 : i32, i32, i32
  }
}

</mosaic_0001>

<llo_original>
// kernel: fcn_head.1
$region0: #{fcn_head.1}
  #allocation0 [shape = 'u32[]', space=smem, size = 0x4, offset = 0x4, fixed_abs, tag = 'smem constant byte address 0x4 - core index']
  #allocation1 [shape = 'u32[144,128]{1,0:T(1,128)}', space=vmem, size = 0x12000, scoped, tag = 'internal scratch']
  %s0 = inlined_call_operand.vmem [shape: bf16[4,188,32], index: 0, kind: input, shape index: {}]
  %s1 = inlined_call_operand.vmem [shape: bf16[9,32,8], index: 1, kind: input, shape index: {}]
  %s2 = inlined_call_operand.vmem [shape: f32[1,8], index: 2, kind: input, shape index: {}]
  %s3 = inlined_call_operand.vmem [shape: bf16[8,128], index: 3, kind: input, shape index: {}]
  %s4 = inlined_call_operand.vmem [shape: f32[1,128], index: 4, kind: input, shape index: {}]
  %s5 = inlined_call_operand.vmem [shape: f32[4,144,128], index: 5, kind: output, shape index: {}]
  %s6 = sld [smem:[#allocation0]]
  $region53: #{fcn_head.1} parent=0
    _
  %s8 = ssub.s32 1, %s6
  %s9 = scalar_select 0, %s8, %s6
  loop: start=0, step=1, limit=6
  $region2: #{fcn_head.1} parent=0 // loop_pre_header
    _
  $region3: #{fcn_head.1} parent=0 // loop_header
    %s11 = sphi 0, %s15
    %p12 = scmp.ge.s32.totalorder %s11, 6
    %s21 = sphi 0, %s23
    %s24 = sphi 0, %s21
    %s25 = sphi 0, %s24
    %s41 = sphi 0, %s25
    %s45 = sphi 0, %s45
    %s47 = sphi 0, %s45
    %s48 = sphi 0, %s47
    %s62 = sphi 0, %s48
    %s66 = sphi 0, %s66
    %s68 = sphi 0, %s66
    %s69 = sphi 0, %s68
    %s83 = sphi 0, %s69
    %s87 = sphi 0, %s87
    %s89 = sphi 0, %s87
    %s90 = sphi 0, %s89
    %s104 = sphi 0, %s90
    %s108 = sphi 0, %s108
    %s110 = sphi 0, %s108
    %s111 = sphi 0, %s110
    %s125 = sphi 0, %s111
    %s131 = sphi 0, %s133
    %s134 = sphi 0, %s131
    %s135 = sphi 0, %s134
    %s151 = sphi 0, %s135
  $region4: #{fcn_head.1} parent=0 // loop_header_branch
    %14 = sbr.rel (%p12) target = $region8
  $region5: #{fcn_head.1} parent=0 // loop_body
    %s16 = ssub.s32 %s11, 1
    %s17 = ssub.s32 %s11, 2
    %s18 = sadd.s32 %s11, 1
    %s19 = ssub.s32 %s11, %s18
    %p20 = scmp.eq.s32.totalorder %s19, 0
    %s22 = sadd.s32 %s21, 1
    %s23 = scalar_select %p20, %s21, %s22
    %p26 = pneg %p20
    %p27 = scmp.eq.s32.totalorder %s11, 3
    %p28 = por %p26, %p27
    %p29 = scmp.ne.s32.totalorder %s21, %s24
    %p30 = scmp.eq.s32.totalorder %s11, 0
    %p31 = por %p29, %p30
    %p32 = scmp.ne.s32.totalorder %s21, %s24
    %p33 = scmp.eq.s32.totalorder %s16, 3
    %p34 = por %p32, %p33
    %p35 = scmp.ne.s32.totalorder %s24, %s25
    %p36 = scmp.eq.s32.totalorder %s16, 0
    %p37 = por %p35, %p36
    %p38 = scmp.ne.s32.totalorder %s24, %s25
    %p39 = scmp.eq.s32.totalorder %s17, 3
    %p40 = por %p38, %p39
    %p42 = scmp.ne.s32.totalorder %s25, %s41
    %p43 = scmp.eq.s32.totalorder %s17, 0
    %p44 = por %p42, %p43
    %s46 = sadd.s32 %s45, 1
    %p49 = scmp.eq.s32.totalorder %s11, 3
    %p50 = scmp.ne.s32.totalorder %s45, %s47
    %p51 = scmp.eq.s32.totalorder %s11, 0
    %p52 = por %p50, %p51
    %p53 = scmp.ne.s32.totalorder %s45, %s47
    %p54 = scmp.eq.s32.totalorder %s16, 3
    %p55 = por %p53, %p54
    %p56 = scmp.ne.s32.totalorder %s47, %s48
    %p57 = scmp.eq.s32.totalorder %s16, 0
    %p58 = por %p56, %p57
    %p59 = scmp.ne.s32.totalorder %s47, %s48
    %p60 = scmp.eq.s32.totalorder %s17, 3
    %p61 = por %p59, %p60
    %p63 = scmp.ne.s32.totalorder %s48, %s62
    %p64 = scmp.eq.s32.totalorder %s17, 0
    %p65 = por %p63, %p64
    %s67 = sadd.s32 %s66, 1
    %p70 = scmp.eq.s32.totalorder %s11, 3
    %p71 = scmp.ne.s32.totalorder %s66, %s68
    %p72 = scmp.eq.s32.totalorder %s11, 0
    %p73 = por %p71, %p72
    %p74 = scmp.ne.s32.totalorder %s66, %s68
    %p75 = scmp.eq.s32.totalorder %s16, 3
    %p76 = por %p74, %p75
    %p77 = scmp.ne.s32.totalorder %s68, %s69
    %p78 = scmp.eq.s32.totalorder %s16, 0
    %p79 = por %p77, %p78
    %p80 = scmp.ne.s32.totalorder %s68, %s69
    %p81 = scmp.eq.s32.totalorder %s17, 3
    %p82 = por %p80, %p81
    %p84 = scmp.ne.s32.totalorder %s69, %s83
    %p85 = scmp.eq.s32.totalorder %s17, 0
    %p86 = por %p84, %p85
    %s88 = sadd.s32 %s87, 1
    %p91 = scmp.eq.s32.totalorder %s11, 3
    %p92 = scmp.ne.s32.totalorder %s87, %s89
    %p93 = scmp.eq.s32.totalorder %s11, 0
    %p94 = por %p92, %p93
    %p95 = scmp.ne.s32.totalorder %s87, %s89
    %p96 = scmp.eq.s32.totalorder %s16, 3
    %p97 = por %p95, %p96
    %p98 = scmp.ne.s32.totalorder %s89, %s90
    %p99 = scmp.eq.s32.totalorder %s16, 0
    %p100 = por %p98, %p99
    %p101 = scmp.ne.s32.totalorder %s89, %s90
    %p102 = scmp.eq.s32.totalorder %s17, 3
    %p103 = por %p101, %p102
    %p105 = scmp.ne.s32.totalorder %s90, %s104
    %p106 = scmp.eq.s32.totalorder %s17, 0
    %p107 = por %p105, %p106
    %s109 = sadd.s32 %s108, 1
    %p112 = scmp.eq.s32.totalorder %s11, 3
    %p113 = scmp.ne.s32.totalorder %s108, %s110
    %p114 = scmp.eq.s32.totalorder %s11, 0
    %p115 = por %p113, %p114
    %p116 = scmp.ne.s32.totalorder %s108, %s110
    %p117 = scmp.eq.s32.totalorder %s16, 3
    %p118 = por %p116, %p117
    %p119 = scmp.ne.s32.totalorder %s110, %s111
    %p120 = scmp.eq.s32.totalorder %s16, 0
    %p121 = por %p119, %p120
    %p122 = scmp.ne.s32.totalorder %s110, %s111
    %p123 = scmp.eq.s32.totalorder %s17, 3
    %p124 = por %p122, %p123
    %p126 = scmp.ne.s32.totalorder %s111, %s125
    %p127 = scmp.eq.s32.totalorder %s17, 0
    %p128 = por %p126, %p127
    %s129 = ssub.s32 %s11, %s18
    %p130 = scmp.eq.s32.totalorder %s129, 0
    %s132 = sadd.s32 %s131, 1
    %s133 = scalar_select %p130, %s131, %s132
    %p136 = pneg %p130
    %p137 = scmp.eq.s32.totalorder %s11, 3
    %p138 = por %p136, %p137
    %p139 = scmp.ne.s32.totalorder %s131, %s134
    %p140 = scmp.eq.s32.totalorder %s11, 0
    %p141 = por %p139, %p140
    %p142 = scmp.ne.s32.totalorder %s131, %s134
    %p143 = scmp.eq.s32.totalorder %s16, 3
    %p144 = por %p142, %p143
    %p145 = scmp.ne.s32.totalorder %s134, %s135
    %p146 = scmp.eq.s32.totalorder %s16, 0
    %p147 = por %p145, %p146
    %p148 = scmp.ne.s32.totalorder %s134, %s135
    %p149 = scmp.eq.s32.totalorder %s17, 3
    %p150 = por %p148, %p149
    %p152 = scmp.ne.s32.totalorder %s135, %s151
    %p153 = scmp.eq.s32.totalorder %s17, 0
    %p154 = por %p152, %p153
    %p155 = scmp.le.s32.totalorder 1, %s11
    %p156 = scmp.lt.s32.totalorder %s11, 5
    %p157 = pnand %p155, %p156
    %p158 = pneg %p157
    // Predicated region
    $region9: #{fcn_head.1} parent=5 // pred_check
      _
    $region10: #{fcn_head.1} parent=5 // pred_check_branch
      %160 = sbr.rel (%p157) target = $region12
    $region11: #{fcn_head.1} parent=5 // pred_region
      %s161 = ssub.s32 %s11, 1
      // Predicated region
      $region13: #{fcn_head.1} parent=11 // pred_check
        %p162 = pneg %p58
      $region14: #{fcn_head.1} parent=11 // pred_check_branch
        %164 = sbr.rel (%p162) target = $region16
      $region15: #{fcn_head.1} parent=11 // pred_region
        _
      $region16: #{fcn_head.1} parent=11 // pred_fallthru
        _
      // Predicated region
      $region17: #{fcn_head.1} parent=11 // pred_check
        %p165 = pneg %p79
      $region18: #{fcn_head.1} parent=11 // pred_check_branch
        %167 = sbr.rel (%p165) target = $region20
      $region19: #{fcn_head.1} parent=11 // pred_region
        _
      $region20: #{fcn_head.1} parent=11 // pred_fallthru
        _
      // Predicated region
      $region21: #{fcn_head.1} parent=11 // pred_check
        %p168 = pneg %p100
      $region22: #{fcn_head.1} parent=11 // pred_check_branch
        %170 = sbr.rel (%p168) target = $region24
      $region23: #{fcn_head.1} parent=11 // pred_region
        _
      $region24: #{fcn_head.1} parent=11 // pred_fallthru
        _
      // Predicated region
      $region25: #{fcn_head.1} parent=11 // pred_check
        %p171 = pneg %p121
      $region26: #{fcn_head.1} parent=11 // pred_check_branch
        %173 = sbr.rel (%p171) target = $region28
      $region27: #{fcn_head.1} parent=11 // pred_region
        _
      $region28: #{fcn_head.1} parent=11 // pred_fallthru
        _
    $region12: #{fcn_head.1} parent=5 // pred_fallthru
      _
    %p174 = scmp.lt.s32.totalorder %s11, 4
    // Predicated region
    $region29: #{fcn_head.1} parent=5 // pred_check
      %p175 = pneg %p174
    $region30: #{fcn_head.1} parent=5 // pred_check_branch
      %177 = sbr.rel (%p175) target = $region32
    $region31: #{fcn_head.1} parent=5 // pred_region
      // Predicated region
      $region33: #{fcn_head.1} parent=31 // pred_check
        %p178 = pneg %p31
      $region34: #{fcn_head.1} parent=31 // pred_check_branch
        %180 = sbr.rel (%p178) target = $region36
      $region35: #{fcn_head.1} parent=31 // pred_region
        %p181 = scmp.lt.s32.totalorder %s11, 3
        %s182 = scalar_select %p181, %s11, 3
        %s183 = smul.addr %s182, 24
        %s184 = smul.addr %s183, 4
        %s185 = scalar_lea.vmem %s0, %s184
      $region36: #{fcn_head.1} parent=31 // pred_fallthru
        _
    $region32: #{fcn_head.1} parent=5 // pred_fallthru
      _
    %p186 = scmp.le.s32.totalorder 1, %s11
    %p187 = scmp.lt.s32.totalorder %s11, 5
    %p188 = pnand %p186, %p187
    %p189 = pneg %p188
    // Predicated region
    $region37: #{fcn_head.1} parent=5 // pred_check
      _
    $region38: #{fcn_head.1} parent=5 // pred_check_branch
      %191 = sbr.rel (%p188) target = $region40
    $region39: #{fcn_head.1} parent=5 // pred_region
      %s192 = ssub.s32 %s11, 1
      %p193 = scmp.lt.s32.totalorder %s16, 3
      %s194 = scalar_select %p193, %s16, 3
      %s195 = smul.addr %s194, 24
      %s196 = smul.addr %s195, 4
      %s197 = scalar_lea.vmem %s0, %s196
      %p198 = pneg %p37
      %p199 = pneg %p34
      %p200 = pneg %p58
      %p201 = pneg %p55
      %p202 = pneg %p79
      %p203 = pneg %p76
      %p204 = pneg %p100
      %p205 = pneg %p97
      %p206 = pneg %p121
      %p207 = pneg %p118
      %p208 = pneg %p147
      %p209 = pneg %p144
      %p210 = scmp.lt.s32.totalorder %s16, 3
      %s211 = scalar_select %p210, %s16, 3
      %s212 = smul.addr %s211, 18
      %s213 = smul.addr %s212, 8
      %s214 = scalar_lea.vmem %s5, %s213
      %p215 = scmp.lt.s32.totalorder %s16, 3
      %s216 = scalar_select %p215, %s16, 3
      %s217 = smul.addr %s216, 24
      %s218 = smul.addr %s217, 4
      %s219 = scalar_lea.vmem %s0, %s218
      %p220 = scmp.lt.s32.totalorder %s16, 3
      %s221 = scalar_select %p220, %s16, 3
      %s222 = smul.addr %s221, 18
      %s223 = smul.addr %s222, 8
      %s224 = scalar_lea.vmem %s5, %s223
      %v226 = vld [vmem:[%s219] sm:$0xf]
      %v227 = vld [vmem:[%s219 + $0x4] sm:$0xf]
      %v228 = vld [vmem:[%s219 + $0x8] sm:$0xf]
      %v229 = vld [vmem:[%s219 + $0xc] sm:$0xf]
      %v230 = vld [vmem:[%s219 + $0x10] sm:$0xf]
      %v231 = vld [vmem:[%s219 + $0x14] sm:$0xf]
      %v232 = vld [vmem:[%s219 + $0x18] sm:$0xf]
      %v233 = vld [vmem:[%s219 + $0x1c] sm:$0xf]
      %v234 = vld [vmem:[%s219 + $0x20] sm:$0xf]
      %v235 = vld [vmem:[%s219 + $0x24] sm:$0xf]
      %v236 = vld [vmem:[%s219 + $0x28] sm:$0xf]
      %v237 = vld [vmem:[%s219 + $0x2c] sm:$0xf]
      %v238 = vld [vmem:[%s219 + $0x30] sm:$0xf]
      %v239 = vld [vmem:[%s219 + $0x34] sm:$0xf]
      %v240 = vld [vmem:[%s219 + $0x38] sm:$0xf]
      %v241 = vld [vmem:[%s219 + $0x3c] sm:$0xf]
      %v242 = vld [vmem:[%s219 + $0x40] sm:$0xf]
      %v243 = vld [vmem:[%s219 + $0x44] sm:$0xf]
      %v244 = vld [vmem:[%s219 + $0x48] sm:$0xf]
      %v245 = vld [vmem:[%s219 + $0x4c] sm:$0xf]
      %v246 = vld [vmem:[%s219 + $0x50] sm:$0xf]
      %v247 = vld [vmem:[%s219 + $0x54] sm:$0xf]
      %v248 = vld [vmem:[%s219 + $0x58] sm:$0xf]
      %v249 = vld [vmem:[%s1] sm:$0xf]
      %v250 = vld [vmem:[%s1 + $0x4] sm:$0xf]
      %v251 = vld [vmem:[%s1 + $0x8] sm:$0xf]
      %v252 = vld [vmem:[%s1 + $0xc] sm:$0xf]
      %s253 = scalar_lea.vmem %s1, 16
      %v254 = vld [vmem:[%s253] sm:$0xf]
      %v255 = vld [vmem:[%s253 + $0x4] sm:$0xf]
      %v256 = vld [vmem:[%s253 + $0x8] sm:$0xf]
      %v257 = vld [vmem:[%s253 + $0xc] sm:$0xf]
      %v277 = vunpack.c.l.b16 %v226
      %v278 = vunpack.c.l.b16 %v227
      %v279 = vunpack.c.l.b16 %v228
      %v280 = vunpack.c.l.b16 %v229
      %v281 = vunpack.c.l.b16 %v230
      %v282 = vunpack.c.l.b16 %v231
      %v283 = vunpack.c.l.b16 %v232
      %v284 = vunpack.c.l.b16 %v233
      %v285 = vunpack.c.l.b16 %v234
      %v286 = vunpack.c.l.b16 %v235
      %v287 = vunpack.c.l.b16 %v236
      %v288 = vunpack.c.l.b16 %v237
      %v289 = vunpack.c.l.b16 %v238
      %v290 = vunpack.c.l.b16 %v239
      %v291 = vunpack.c.l.b16 %v240
      %v292 = vunpack.c.l.b16 %v241
      %v293 = vunpack.c.l.b16 %v242
      %v294 = vunpack.c.l.b16 %v243
      %v295 = vunpack.c.l.b16 %v244
      %v296 = vpack.c.b16 %v278, %v277
      %v297 = vpack.c.b16 %v280, %v279
      %v298 = vpack.c.b16 %v282, %v281
      %v299 = vpack.c.b16 %v284, %v283
      %v300 = vpack.c.b16 %v286, %v285
      %v301 = vpack.c.b16 %v288, %v287
      %v302 = vpack.c.b16 %v290, %v289
      %v303 = vpack.c.b16 %v292, %v291
      %v304 = vpack.c.b16 %v294, %v293
      %v305 = vpack.c.b16 %v295, %v295
      %vm306 = vsmask.f32 7424
      %v308 = vshrl.u32 %v296, 16
      %v310 = vshll.u32 %v296, 16
      %v312 = vrot.slane %v310, 1
      %v313 = vor.u32 %v308, %v312
      %v315 = vshll.u32 %v297, 16
      %v317 = vrot.slane %v315, 1
      %v318 = vsel %vm306, %v313, %v317
      %v319 = vshrl.u32 %v297, 16
      %v321 = vor.u32 %v319, %v317
      %v323 = vshll.u32 %v298, 16
      %v325 = vrot.slane %v323, 1
      %v326 = vsel %vm306, %v321, %v325
      %v327 = vshrl.u32 %v298, 16
      %v329 = vor.u32 %v327, %v325
      %v331 = vshll.u32 %v299, 16
      %v333 = vrot.slane %v331, 1
      %v334 = vsel %vm306, %v329, %v333
      %v335 = vshrl.u32 %v299, 16
      %v337 = vor.u32 %v335, %v333
      %v339 = vshll.u32 %v300, 16
      %v341 = vrot.slane %v339, 1
      %v342 = vsel %vm306, %v337, %v341
      %v343 = vshrl.u32 %v300, 16
      %v345 = vor.u32 %v343, %v341
      %v347 = vshll.u32 %v301, 16
      %v349 = vrot.slane %v347, 1
      %v350 = vsel %vm306, %v345, %v349
      %v351 = vshrl.u32 %v301, 16
      %v353 = vor.u32 %v351, %v349
      %v355 = vshll.u32 %v302, 16
      %v357 = vrot.slane %v355, 1
      %v358 = vsel %vm306, %v353, %v357
      %v359 = vshrl.u32 %v302, 16
      %v361 = vor.u32 %v359, %v357
      %v363 = vshll.u32 %v303, 16
      %v365 = vrot.slane %v363, 1
      %v366 = vsel %vm306, %v361, %v365
      %v367 = vshrl.u32 %v303, 16
      %v369 = vor.u32 %v367, %v365
      %v371 = vshll.u32 %v304, 16
      %v373 = vrot.slane %v371, 1
      %v374 = vsel %vm306, %v369, %v373
      %v375 = vshrl.u32 %v304, 16
      %v377 = vor.u32 %v375, %v373
      %v379 = vshll.u32 %v305, 16
      %v381 = vrot.slane %v379, 1
      %v382 = vsel %vm306, %v377, %v381
      %v387 = vunpack.c.l.b16 %v254
      %v388 = vunpack.c.l.b16 %v255
      %v389 = vunpack.c.l.b16 %v256
      %v390 = vunpack.c.l.b16 %v257
      %v391 = vpack.c.b16 %v388, %v387
      %v392 = vpack.c.b16 %v390, %v389
      %vm395 = vcmask 261120
      %v397 = vsel %vm395, %v318, 0
      %v400 = vsel %vm395, %v326, 0
      %v403 = vsel %vm395, %v334, 0
      %v406 = vsel %vm395, %v342, 0
      %v409 = vsel %vm395, %v350, 0
      %v412 = vsel %vm395, %v358, 0
      %v415 = vsel %vm395, %v366, 0
      %v418 = vsel %vm395, %v374, 0
      %v421 = vsel %vm395, %v382, 0
      %423 = vmatprep.subr.bf16.mxu0 0
      %424 = vmatpush1.bf16.msra.mxu0 0
      %425 = vmatprep.subr.bf16.mxu0 0
      %426 = vmatpush1.bf16.msra.mxu0 0
      %427 = vmatprep.subr.bf16.mxu0 0
      %428 = vmatpush1.bf16.msra.mxu0 0
      %429 = vmatprep.subr.bf16.mxu0 0
      %430 = vmatpush1.bf16.msra.mxu0 0
      %431 = vmatprep.subr.bf16.mxu0 0
      %432 = vmatpush1.bf16.msra.mxu0 0
      %433 = vmatprep.subr.bf16.mxu0 0
      %434 = vmatpush1.bf16.msra.mxu0 0
      %435 = vmatprep.subr.bf16.mxu0 0
      %436 = vmatpush1.bf16.msra.mxu0 %v392
      %437 = vmatprep.subr.bf16.mxu0 0
      %438 = vmatpush1.bf16.msra.mxu0 %v391
      %439 = vmatprep.subr.bf16.mxu0 0
      %440 = vmatpush2.bf16.msra.mxu0 0
      %441 = vmatprep.subr.bf16.mxu0 0
      %442 = vmatpush2.bf16.msra.mxu0 0
      %443 = vmatprep.subr.bf16.mxu0 0
      %444 = vmatpush2.bf16.msra.mxu0 0
      %445 = vmatprep.subr.bf16.mxu0 0
      %446 = vmatpush2.bf16.msra.mxu0 0
      %447 = vmatprep.subr.bf16.mxu0 0
      %448 = vmatpush2.bf16.msra.mxu0 0
      %449 = vmatprep.subr.bf16.mxu0 0
      %450 = vmatpush2.bf16.msra.mxu0 0
      %451 = vmatprep.subr.bf16.mxu0 0
      %452 = vmatpush2.bf16.msra.mxu0 0
      %453 = vmatprep.subr.bf16.mxu0 0
      %454 = vmatpush2.bf16.msra.mxu0 0
      %455 = vmatprep.mubr.bf16.mxu0 0
      %456 = vmatmul.mubr.bf16.gmra.mxu0 %v397
      %v457 = vpop.f32.mrf.mxu0
      %v458 = vadd.f32 0.0, %v457
      %v459 = vpop.f32.mrf.mxu0
      %v460 = vpop.f32.mrf.mxu0
      %v461 = vadd.f32 0.0, %v460
      %v462 = vpop.f32.mrf.mxu0
      %463 = vmatprep.mubr.bf16.mxu0 0
      %464 = vmatmul.mubr.bf16.gmra.mxu0 %v400
      %v465 = vpop.f32.mrf.mxu0
      %v466 = vadd.f32 0.0, %v465
      %v467 = vpop.f32.mrf.mxu0
      %v468 = vpop.f32.mrf.mxu0
      %v469 = vadd.f32 0.0, %v468
      %v470 = vpop.f32.mrf.mxu0
      %471 = vmatprep.mubr.bf16.mxu0 0
      %472 = vmatmul.mubr.bf16.gmra.mxu0 %v403
      %v473 = vpop.f32.mrf.mxu0
      %v474 = vadd.f32 0.0, %v473
      %v475 = vpop.f32.mrf.mxu0
      %v476 = vpop.f32.mrf.mxu0
      %v477 = vadd.f32 0.0, %v476
      %v478 = vpop.f32.mrf.mxu0
      %479 = vmatprep.mubr.bf16.mxu0 0
      %480 = vmatmul.mubr.bf16.gmra.mxu0 %v406
      %v481 = vpop.f32.mrf.mxu0
      %v482 = vadd.f32 0.0, %v481
      %v483 = vpop.f32.mrf.mxu0
      %v484 = vpop.f32.mrf.mxu0
      %v485 = vadd.f32 0.0, %v484
      %v486 = vpop.f32.mrf.mxu0
      %487 = vmatprep.mubr.bf16.mxu0 0
      %488 = vmatmul.mubr.bf16.gmra.mxu0 %v409
      %v489 = vpop.f32.mrf.mxu0
      %v490 = vadd.f32 0.0, %v489
      %v491 = vpop.f32.mrf.mxu0
      %v492 = vpop.f32.mrf.mxu0
      %v493 = vadd.f32 0.0, %v492
      %v494 = vpop.f32.mrf.mxu0
      %495 = vmatprep.mubr.bf16.mxu0 0
      %496 = vmatmul.mubr.bf16.gmra.mxu0 %v412
      %v497 = vpop.f32.mrf.mxu0
      %v498 = vadd.f32 0.0, %v497
      %v499 = vpop.f32.mrf.mxu0
      %v500 = vpop.f32.mrf.mxu0
      %v501 = vadd.f32 0.0, %v500
      %v502 = vpop.f32.mrf.mxu0
      %503 = vmatprep.mubr.bf16.mxu0 0
      %504 = vmatmul.mubr.bf16.gmra.mxu0 %v415
      %v505 = vpop.f32.mrf.mxu0
      %v506 = vadd.f32 0.0, %v505
      %v507 = vpop.f32.mrf.mxu0
      %v508 = vpop.f32.mrf.mxu0
      %v509 = vadd.f32 0.0, %v508
      %v510 = vpop.f32.mrf.mxu0
      %511 = vmatprep.mubr.bf16.mxu0 0
      %512 = vmatmul.mubr.bf16.gmra.mxu0 %v418
      %v513 = vpop.f32.mrf.mxu0
      %v514 = vadd.f32 0.0, %v513
      %v515 = vpop.f32.mrf.mxu0
      %v516 = vpop.f32.mrf.mxu0
      %v517 = vadd.f32 0.0, %v516
      %v518 = vpop.f32.mrf.mxu0
      %519 = vmatprep.mubr.bf16.mxu0 0
      %520 = vmatmul.mubr.bf16.gmra.mxu0 %v421
      %v521 = vpop.f32.mrf.mxu0
      %v522 = vadd.f32 0.0, %v521
      %v523 = vpop.f32.mrf.mxu0
      %v524 = vpop.f32.mrf.mxu0
      %v525 = vadd.f32 0.0, %v524
      %v526 = vpop.f32.mrf.mxu0
      %527 = vdwg.mxu0
      %v532 = vunpack.c.l.b16 %v249
      %v533 = vunpack.c.l.b16 %v250
      %v534 = vunpack.c.l.b16 %v251
      %v535 = vunpack.c.l.b16 %v252
      %v536 = vpack.c.b16 %v533, %v532
      %v537 = vpack.c.b16 %v535, %v534
      %v540 = vsel %vm395, %v296, 0
      %v542 = vsel %vm395, %v297, 0
      %v544 = vsel %vm395, %v298, 0
      %v546 = vsel %vm395, %v299, 0
      %v548 = vsel %vm395, %v300, 0
      %v550 = vsel %vm395, %v301, 0
      %v552 = vsel %vm395, %v302, 0
      %v554 = vsel %vm395, %v303, 0
      %v556 = vsel %vm395, %v304, 0
      %558 = vmatprep.subr.bf16.mxu0 0
      %559 = vmatpush1.bf16.msra.mxu0 0
      %560 = vmatprep.subr.bf16.mxu0 0
      %561 = vmatpush1.bf16.msra.mxu0 0
      %562 = vmatprep.subr.bf16.mxu0 0
      %563 = vmatpush1.bf16.msra.mxu0 0
      %564 = vmatprep.subr.bf16.mxu0 0
      %565 = vmatpush1.bf16.msra.mxu0 0
      %566 = vmatprep.subr.bf16.mxu0 0
      %567 = vmatpush1.bf16.msra.mxu0 0
      %568 = vmatprep.subr.bf16.mxu0 0
      %569 = vmatpush1.bf16.msra.mxu0 0
      %570 = vmatprep.subr.bf16.mxu0 0
      %571 = vmatpush1.bf16.msra.mxu0 %v537
      %572 = vmatprep.subr.bf16.mxu0 0
      %573 = vmatpush1.bf16.msra.mxu0 %v536
      %574 = vmatprep.subr.bf16.mxu0 0
      %575 = vmatpush2.bf16.msra.mxu0 0
      %576 = vmatprep.subr.bf16.mxu0 0
      %577 = vmatpush2.bf16.msra.mxu0 0
      %578 = vmatprep.subr.bf16.mxu0 0
      %579 = vmatpush2.bf16.msra.mxu0 0
      %580 = vmatprep.subr.bf16.mxu0 0
      %581 = vmatpush2.bf16.msra.mxu0 0
      %582 = vmatprep.subr.bf16.mxu0 0
      %583 = vmatpush2.bf16.msra.mxu0 0
      %584 = vmatprep.subr.bf16.mxu0 0
      %585 = vmatpush2.bf16.msra.mxu0 0
      %586 = vmatprep.subr.bf16.mxu0 0
      %587 = vmatpush2.bf16.msra.mxu0 0
      %588 = vmatprep.subr.bf16.mxu0 0
      %589 = vmatpush2.bf16.msra.mxu0 0
      %590 = vmatprep.mubr.bf16.mxu0 0
      %591 = vmatmul.mubr.bf16.gmra.mxu0 %v540
      %v592 = vpop.f32.mrf.mxu0
      %v593 = vadd.f32 %v458, %v592
      %v594 = vpop.f32.mrf.mxu0
      %v595 = vpop.f32.mrf.mxu0
      %v596 = vadd.f32 %v461, %v595
      %v597 = vpop.f32.mrf.mxu0
      %598 = vmatprep.mubr.bf16.mxu0 0
      %599 = vmatmul.mubr.bf16.gmra.mxu0 %v542
      %v600 = vpop.f32.mrf.mxu0
      %v601 = vadd.f32 %v466, %v600
      %v602 = vpop.f32.mrf.mxu0
      %v603 = vpop.f32.mrf.mxu0
      %v604 = vadd.f32 %v469, %v603
      %v605 = vpop.f32.mrf.mxu0
      %606 = vmatprep.mubr.bf16.mxu0 0
      %607 = vmatmul.mubr.bf16.gmra.mxu0 %v544
      %v608 = vpop.f32.mrf.mxu0
      %v609 = vadd.f32 %v474, %v608
      %v610 = vpop.f32.mrf.mxu0
      %v611 = vpop.f32.mrf.mxu0
      %v612 = vadd.f32 %v477, %v611
      %v613 = vpop.f32.mrf.mxu0
      %614 = vmatprep.mubr.bf16.mxu0 0
      %615 = vmatmul.mubr.bf16.gmra.mxu0 %v546
      %v616 = vpop.f32.mrf.mxu0
      %v617 = vadd.f32 %v482, %v616
      %v618 = vpop.f32.mrf.mxu0
      %v619 = vpop.f32.mrf.mxu0
      %v620 = vadd.f32 %v485, %v619
      %v621 = vpop.f32.mrf.mxu0
      %622 = vmatprep.mubr.bf16.mxu0 0
      %623 = vmatmul.mubr.bf16.gmra.mxu0 %v548
      %v624 = vpop.f32.mrf.mxu0
      %v625 = vadd.f32 %v490, %v624
      %v626 = vpop.f32.mrf.mxu0
      %v627 = vpop.f32.mrf.mxu0
      %v628 = vadd.f32 %v493, %v627
      %v629 = vpop.f32.mrf.mxu0
      %630 = vmatprep.mubr.bf16.mxu0 0
      %631 = vmatmul.mubr.bf16.gmra.mxu0 %v550
      %v632 = vpop.f32.mrf.mxu0
      %v633 = vadd.f32 %v498, %v632
      %v634 = vpop.f32.mrf.mxu0
      %v635 = vpop.f32.mrf.mxu0
      %v636 = vadd.f32 %v501, %v635
      %v637 = vpop.f32.mrf.mxu0
      %638 = vmatprep.mubr.bf16.mxu0 0
      %639 = vmatmul.mubr.bf16.gmra.mxu0 %v552
      %v640 = vpop.f32.mrf.mxu0
      %v641 = vadd.f32 %v506, %v640
      %v642 = vpop.f32.mrf.mxu0
      %v643 = vpop.f32.mrf.mxu0
      %v644 = vadd.f32 %v509, %v643
      %v645 = vpop.f32.mrf.mxu0
      %646 = vmatprep.mubr.bf16.mxu0 0
      %647 = vmatmul.mubr.bf16.gmra.mxu0 %v554
      %v648 = vpop.f32.mrf.mxu0
      %v649 = vadd.f32 %v514, %v648
      %v650 = vpop.f32.mrf.mxu0
      %v651 = vpop.f32.mrf.mxu0
      %v652 = vadd.f32 %v517, %v651
      %v653 = vpop.f32.mrf.mxu0
      %654 = vmatprep.mubr.bf16.mxu0 0
      %655 = vmatmul.mubr.bf16.gmra.mxu0 %v556
      %v656 = vpop.f32.mrf.mxu0
      %v657 = vadd.f32 %v522, %v656
      %v658 = vpop.f32.mrf.mxu0
      %v659 = vpop.f32.mrf.mxu0
      %v660 = vadd.f32 %v525, %v659
      %v661 = vpop.f32.mrf.mxu0
      %662 = vdwg.mxu0
      %s663 = scalar_lea.vmem %s1, 32
      %v664 = vld [vmem:[%s663] sm:$0xf]
      %v665 = vld [vmem:[%s663 + $0x4] sm:$0xf]
      %v666 = vld [vmem:[%s663 + $0x8] sm:$0xf]
      %v667 = vld [vmem:[%s663 + $0xc] sm:$0xf]
      %vm668 = vcmask 1046528
      %v669 = vrot.slane %v296, 1
      %v670 = vrot.slane %v297, 1
      %v671 = vsel %vm668, %v669, %v670
      %v672 = vrot.slane %v298, 1
      %v673 = vsel %vm668, %v670, %v672
      %v674 = vrot.slane %v299, 1
      %v675 = vsel %vm668, %v672, %v674
      %v676 = vrot.slane %v300, 1
      %v677 = vsel %vm668, %v674, %v676
      %v678 = vrot.slane %v301, 1
      %v679 = vsel %vm668, %v676, %v678
      %v680 = vrot.slane %v302, 1
      %v681 = vsel %vm668, %v678, %v680
      %v682 = vrot.slane %v303, 1
      %v683 = vsel %vm668, %v680, %v682
      %v684 = vrot.slane %v304, 1
      %v685 = vsel %vm668, %v682, %v684
      %v686 = vrot.slane %v305, 1
      %v687 = vsel %vm668, %v684, %v686
      %v692 = vunpack.c.l.b16 %v664
      %v693 = vunpack.c.l.b16 %v665
      %v694 = vunpack.c.l.b16 %v666
      %v695 = vunpack.c.l.b16 %v667
      %v696 = vpack.c.b16 %v693, %v692
      %v697 = vpack.c.b16 %v695, %v694
      %v701 = vsel %vm395, %v671, 0
      %v704 = vsel %vm395, %v673, 0
      %v707 = vsel %vm395, %v675, 0
      %v710 = vsel %vm395, %v677, 0
      %v713 = vsel %vm395, %v679, 0
      %v716 = vsel %vm395, %v681, 0
      %v719 = vsel %vm395, %v683, 0
      %v722 = vsel %vm395, %v685, 0
      %v725 = vsel %vm395, %v687, 0
      %727 = vmatprep.subr.bf16.mxu0 0
      %728 = vmatpush1.bf16.msra.mxu0 0
      %729 = vmatprep.subr.bf16.mxu0 0
      %730 = vmatpush1.bf16.msra.mxu0 0
      %731 = vmatprep.subr.bf16.mxu0 0
      %732 = vmatpush1.bf16.msra.mxu0 0
      %733 = vmatprep.subr.bf16.mxu0 0
      %734 = vmatpush1.bf16.msra.mxu0 0
      %735 = vmatprep.subr.bf16.mxu0 0
      %736 = vmatpush1.bf16.msra.mxu0 0
      %737 = vmatprep.subr.bf16.mxu0 0
      %738 = vmatpush1.bf16.msra.mxu0 0
      %739 = vmatprep.subr.bf16.mxu0 0
      %740 = vmatpush1.bf16.msra.mxu0 %v697
      %741 = vmatprep.subr.bf16.mxu0 0
      %742 = vmatpush1.bf16.msra.mxu0 %v696
      %743 = vmatprep.subr.bf16.mxu0 0
      %744 = vmatpush2.bf16.msra.mxu0 0
      %745 = vmatprep.subr.bf16.mxu0 0
      %746 = vmatpush2.bf16.msra.mxu0 0
      %747 = vmatprep.subr.bf16.mxu0 0
      %748 = vmatpush2.bf16.msra.mxu0 0
      %749 = vmatprep.subr.bf16.mxu0 0
      %750 = vmatpush2.bf16.msra.mxu0 0
      %751 = vmatprep.subr.bf16.mxu0 0
      %752 = vmatpush2.bf16.msra.mxu0 0
      %753 = vmatprep.subr.bf16.mxu0 0
      %754 = vmatpush2.bf16.msra.mxu0 0
      %755 = vmatprep.subr.bf16.mxu0 0
      %756 = vmatpush2.bf16.msra.mxu0 0
      %757 = vmatprep.subr.bf16.mxu0 0
      %758 = vmatpush2.bf16.msra.mxu0 0
      %759 = vmatprep.mubr.bf16.mxu0 0
      %760 = vmatmul.mubr.bf16.gmra.mxu0 %v701
      %v761 = vpop.f32.mrf.mxu0
      %v762 = vadd.f32 0.0, %v761
      %v763 = vpop.f32.mrf.mxu0
      %v764 = vpop.f32.mrf.mxu0
      %v765 = vadd.f32 0.0, %v764
      %v766 = vpop.f32.mrf.mxu0
      %767 = vmatprep.mubr.bf16.mxu0 0
      %768 = vmatmul.mubr.bf16.gmra.mxu0 %v704
      %v769 = vpop.f32.mrf.mxu0
      %v770 = vadd.f32 0.0, %v769
      %v771 = vpop.f32.mrf.mxu0
      %v772 = vpop.f32.mrf.mxu0
      %v773 = vadd.f32 0.0, %v772
      %v774 = vpop.f32.mrf.mxu0
      %775 = vmatprep.mubr.bf16.mxu0 0
      %776 = vmatmul.mubr.bf16.gmra.mxu0 %v707
      %v777 = vpop.f32.mrf.mxu0
      %v778 = vadd.f32 0.0, %v777
      %v779 = vpop.f32.mrf.mxu0
      %v780 = vpop.f32.mrf.mxu0
      %v781 = vadd.f32 0.0, %v780
      %v782 = vpop.f32.mrf.mxu0
      %783 = vmatprep.mubr.bf16.mxu0 0
      %784 = vmatmul.mubr.bf16.gmra.mxu0 %v710
      %v785 = vpop.f32.mrf.mxu0
      %v786 = vadd.f32 0.0, %v785
      %v787 = vpop.f32.mrf.mxu0
      %v788 = vpop.f32.mrf.mxu0
      %v789 = vadd.f32 0.0, %v788
      %v790 = vpop.f32.mrf.mxu0
      %791 = vmatprep.mubr.bf16.mxu0 0
      %792 = vmatmul.mubr.bf16.gmra.mxu0 %v713
      %v793 = vpop.f32.mrf.mxu0
      %v794 = vadd.f32 0.0, %v793
      %v795 = vpop.f32.mrf.mxu0
      %v796 = vpop.f32.mrf.mxu0
      %v797 = vadd.f32 0.0, %v796
      %v798 = vpop.f32.mrf.mxu0
      %799 = vmatprep.mubr.bf16.mxu0 0
      %800 = vmatmul.mubr.bf16.gmra.mxu0 %v716
      %v801 = vpop.f32.mrf.mxu0
      %v802 = vadd.f32 0.0, %v801
      %v803 = vpop.f32.mrf.mxu0
      %v804 = vpop.f32.mrf.mxu0
      %v805 = vadd.f32 0.0, %v804
      %v806 = vpop.f32.mrf.mxu0
      %807 = vmatprep.mubr.bf16.mxu0 0
      %808 = vmatmul.mubr.bf16.gmra.mxu0 %v719
      %v809 = vpop.f32.mrf.mxu0
      %v810 = vadd.f32 0.0, %v809
      %v811 = vpop.f32.mrf.mxu0
      %v812 = vpop.f32.mrf.mxu0
      %v813 = vadd.f32 0.0, %v812
      %v814 = vpop.f32.mrf.mxu0
      %815 = vmatprep.mubr.bf16.mxu0 0
      %816 = vmatmul.mubr.bf16.gmra.mxu0 %v722
      %v817 = vpop.f32.mrf.mxu0
      %v818 = vadd.f32 0.0, %v817
      %v819 = vpop.f32.mrf.mxu0
      %v820 = vpop.f32.mrf.mxu0
      %v821 = vadd.f32 0.0, %v820
      %v822 = vpop.f32.mrf.mxu0
      %823 = vmatprep.mubr.bf16.mxu0 0
      %824 = vmatmul.mubr.bf16.gmra.mxu0 %v725
      %v825 = vpop.f32.mrf.mxu0
      %v826 = vadd.f32 0.0, %v825
      %v827 = vpop.f32.mrf.mxu0
      %v828 = vpop.f32.mrf.mxu0
      %v829 = vadd.f32 0.0, %v828
      %v830 = vpop.f32.mrf.mxu0
      %831 = vdwg.mxu0
      %v832 = vadd.f32 %v593, %v762
      %v833 = vadd.f32 %v596, %v765
      %v834 = vadd.f32 %v601, %v770
      %v835 = vadd.f32 %v604, %v773
      %v836 = vadd.f32 %v609, %v778
      %v837 = vadd.f32 %v612, %v781
      %v838 = vadd.f32 %v617, %v786
      %v839 = vadd.f32 %v620, %v789
      %v840 = vadd.f32 %v625, %v794
      %v841 = vadd.f32 %v628, %v797
      %v842 = vadd.f32 %v633, %v802
      %v843 = vadd.f32 %v636, %v805
      %v844 = vadd.f32 %v641, %v810
      %v845 = vadd.f32 %v644, %v813
      %v846 = vadd.f32 %v649, %v818
      %v847 = vadd.f32 %v652, %v821
      %v848 = vadd.f32 %v657, %v826
      %v849 = vadd.f32 %v660, %v829
      %s850 = scalar_lea.vmem %s1, 48
      %v851 = vld [vmem:[%s850] sm:$0xf]
      %v852 = vld [vmem:[%s850 + $0x4] sm:$0xf]
      %v853 = vld [vmem:[%s850 + $0x8] sm:$0xf]
      %v854 = vld [vmem:[%s850 + $0xc] sm:$0xf]
      %v857 = vunpack.c.l.b16 %v245
      %v858 = vunpack.c.l.b16 %v246
      %v859 = vpack.c.b16 %v857, %v295
      %v860 = vpack.c.b16 %v858, %v858
      %v861 = vrot.slane %v859, 1
      %v862 = vsel %vm668, %v684, %v861
      %v863 = vrot.slane %v860, 1
      %v864 = vsel %vm668, %v861, %v863
      %v869 = vunpack.c.l.b16 %v851
      %v870 = vunpack.c.l.b16 %v852
      %v871 = vunpack.c.l.b16 %v853
      %v872 = vunpack.c.l.b16 %v854
      %v873 = vpack.c.b16 %v870, %v869
      %v874 = vpack.c.b16 %v872, %v871
      %v878 = vsel %vm395, %v862, 0
      %v881 = vsel %vm395, %v864, 0
      %883 = vmatprep.subr.bf16.mxu0 0
      %884 = vmatpush1.bf16.msra.mxu0 0
      %885 = vmatprep.subr.bf16.mxu0 0
      %886 = vmatpush1.bf16.msra.mxu0 0
      %887 = vmatprep.subr.bf16.mxu0 0
      %888 = vmatpush1.bf16.msra.mxu0 0
      %889 = vmatprep.subr.bf16.mxu0 0
      %890 = vmatpush1.bf16.msra.mxu0 0
      %891 = vmatprep.subr.bf16.mxu0 0
      %892 = vmatpush1.bf16.msra.mxu0 0
      %893 = vmatprep.subr.bf16.mxu0 0
      %894 = vmatpush1.bf16.msra.mxu0 0
      %895 = vmatprep.subr.bf16.mxu0 0
      %896 = vmatpush1.bf16.msra.mxu0 %v874
      %897 = vmatprep.subr.bf16.mxu0 0
      %898 = vmatpush1.bf16.msra.mxu0 %v873
      %899 = vmatprep.subr.bf16.mxu0 0
      %900 = vmatpush2.bf16.msra.mxu0 0
      %901 = vmatprep.subr.bf16.mxu0 0
      %902 = vmatpush2.bf16.msra.mxu0 0
      %903 = vmatprep.subr.bf16.mxu0 0
      %904 = vmatpush2.bf16.msra.mxu0 0
      %905 = vmatprep.subr.bf16.mxu0 0
      %906 = vmatpush2.bf16.msra.mxu0 0
      %907 = vmatprep.subr.bf16.mxu0 0
      %908 = vmatpush2.bf16.msra.mxu0 0
      %909 = vmatprep.subr.bf16.mxu0 0
      %910 = vmatpush2.bf16.msra.mxu0 0
      %911 = vmatprep.subr.bf16.mxu0 0
      %912 = vmatpush2.bf16.msra.mxu0 0
      %913 = vmatprep.subr.bf16.mxu0 0
      %914 = vmatpush2.bf16.msra.mxu0 0
      %915 = vmatprep.mubr.bf16.mxu0 0
      %916 = vmatmul.mubr.bf16.gmra.mxu0 %v704
      %v917 = vpop.f32.mrf.mxu0
      %v918 = vadd.f32 0.0, %v917
      %v919 = vpop.f32.mrf.mxu0
      %v920 = vpop.f32.mrf.mxu0
      %v921 = vadd.f32 0.0, %v920
      %v922 = vpop.f32.mrf.mxu0
      %923 = vmatprep.mubr.bf16.mxu0 0
      %924 = vmatmul.mubr.bf16.gmra.mxu0 %v707
      %v925 = vpop.f32.mrf.mxu0
      %v926 = vadd.f32 0.0, %v925
      %v927 = vpop.f32.mrf.mxu0
      %v928 = vpop.f32.mrf.mxu0
      %v929 = vadd.f32 0.0, %v928
      %v930 = vpop.f32.mrf.mxu0
      %931 = vmatprep.mubr.bf16.mxu0 0
      %932 = vmatmul.mubr.bf16.gmra.mxu0 %v710
      %v933 = vpop.f32.mrf.mxu0
      %v934 = vadd.f32 0.0, %v933
      %v935 = vpop.f32.mrf.mxu0
      %v936 = vpop.f32.mrf.mxu0
      %v937 = vadd.f32 0.0, %v936
      %v938 = vpop.f32.mrf.mxu0
      %939 = vmatprep.mubr.bf16.mxu0 0
      %940 = vmatmul.mubr.bf16.gmra.mxu0 %v713
      %v941 = vpop.f32.mrf.mxu0
      %v942 = vadd.f32 0.0, %v941
      %v943 = vpop.f32.mrf.mxu0
      %v944 = vpop.f32.mrf.mxu0
      %v945 = vadd.f32 0.0, %v944
      %v946 = vpop.f32.mrf.mxu0
      %947 = vmatprep.mubr.bf16.mxu0 0
      %948 = vmatmul.mubr.bf16.gmra.mxu0 %v716
      %v949 = vpop.f32.mrf.mxu0
      %v950 = vadd.f32 0.0, %v949
      %v951 = vpop.f32.mrf.mxu0
      %v952 = vpop.f32.mrf.mxu0
      %v953 = vadd.f32 0.0, %v952
      %v954 = vpop.f32.mrf.mxu0
      %955 = vmatprep.mubr.bf16.mxu0 0
      %956 = vmatmul.mubr.bf16.gmra.mxu0 %v719
      %v957 = vpop.f32.mrf.mxu0
      %v958 = vadd.f32 0.0, %v957
      %v959 = vpop.f32.mrf.mxu0
      %v960 = vpop.f32.mrf.mxu0
      %v961 = vadd.f32 0.0, %v960
      %v962 = vpop.f32.mrf.mxu0
      %963 = vmatprep.mubr.bf16.mxu0 0
      %964 = vmatmul.mubr.bf16.gmra.mxu0 %v722
      %v965 = vpop.f32.mrf.mxu0
      %v966 = vadd.f32 0.0, %v965
      %v967 = vpop.f32.mrf.mxu0
      %v968 = vpop.f32.mrf.mxu0
      %v969 = vadd.f32 0.0, %v968
      %v970 = vpop.f32.mrf.mxu0
      %971 = vmatprep.mubr.bf16.mxu0 0
      %972 = vmatmul.mubr.bf16.gmra.mxu0 %v878
      %v973 = vpop.f32.mrf.mxu0
      %v974 = vadd.f32 0.0, %v973
      %v975 = vpop.f32.mrf.mxu0
      %v976 = vpop.f32.mrf.mxu0
      %v977 = vadd.f32 0.0, %v976
      %v978 = vpop.f32.mrf.mxu0
      %979 = vmatprep.mubr.bf16.mxu0 0
      %980 = vmatmul.mubr.bf16.gmra.mxu0 %v881
      %v981 = vpop.f32.mrf.mxu0
      %v982 = vadd.f32 0.0, %v981
      %v983 = vpop.f32.mrf.mxu0
      %v984 = vpop.f32.mrf.mxu0
      %v985 = vadd.f32 0.0, %v984
      %v986 = vpop.f32.mrf.mxu0
      %987 = vdwg.mxu0
      %v988 = vadd.f32 %v832, %v918
      %v989 = vadd.f32 %v833, %v921
      %v990 = vadd.f32 %v834, %v926
      %v991 = vadd.f32 %v835, %v929
      %v992 = vadd.f32 %v836, %v934
      %v993 = vadd.f32 %v837, %v937
      %v994 = vadd.f32 %v838, %v942
      %v995 = vadd.f32 %v839, %v945
      %v996 = vadd.f32 %v840, %v950
      %v997 = vadd.f32 %v841, %v953
      %v998 = vadd.f32 %v842, %v958
      %v999 = vadd.f32 %v843, %v961
      %v1000 = vadd.f32 %v844, %v966
      %v1001 = vadd.f32 %v845, %v969
      %v1002 = vadd.f32 %v846, %v974
      %v1003 = vadd.f32 %v847, %v977
      %v1004 = vadd.f32 %v848, %v982
      %v1005 = vadd.f32 %v849, %v985
      %s1006 = scalar_lea.vmem %s1, 64
      %v1007 = vld [vmem:[%s1006] sm:$0xf]
      %v1008 = vld [vmem:[%s1006 + $0x4] sm:$0xf]
      %v1009 = vld [vmem:[%s1006 + $0x8] sm:$0xf]
      %v1010 = vld [vmem:[%s1006 + $0xc] sm:$0xf]
      %vm1011 = vsmask.f32 6400
      %v1012 = vrot.slane %v319, 1
      %v1013 = vrot.slane %v315, 2
      %v1014 = vor.u32 %v1012, %v1013
      %v1015 = vrot.slane %v327, 1
      %v1016 = vrot.slane %v323, 2
      %v1017 = vor.u32 %v1015, %v1016
      %v1018 = vsel %vm1011, %v1014, %v1017
      %v1019 = vrot.slane %v335, 1
      %v1020 = vrot.slane %v331, 2
      %v1021 = vor.u32 %v1019, %v1020
      %v1022 = vsel %vm1011, %v1017, %v1021
      %v1023 = vrot.slane %v343, 1
      %v1024 = vrot.slane %v339, 2
      %v1025 = vor.u32 %v1023, %v1024
      %v1026 = vsel %vm1011, %v1021, %v1025
      %v1027 = vrot.slane %v351, 1
      %v1028 = vrot.slane %v347, 2
      %v1029 = vor.u32 %v1027, %v1028
      %v1030 = vsel %vm1011, %v1025, %v1029
      %v1031 = vrot.slane %v359, 1
      %v1032 = vrot.slane %v355, 2
      %v1033 = vor.u32 %v1031, %v1032
      %v1034 = vsel %vm1011, %v1029, %v1033
      %v1035 = vrot.slane %v367, 1
      %v1036 = vrot.slane %v363, 2
      %v1037 = vor.u32 %v1035, %v1036
      %v1038 = vsel %vm1011, %v1033, %v1037
      %v1039 = vrot.slane %v375, 1
      %v1040 = vrot.slane %v371, 2
      %v1041 = vor.u32 %v1039, %v1040
      %v1042 = vsel %vm1011, %v1037, %v1041
      %v1044 = vshrl.u32 %v859, 16
      %v1046 = vrot.slane %v1044, 1
      %v1047 = vshll.u32 %v859, 16
      %v1049 = vrot.slane %v1047, 2
      %v1050 = vor.u32 %v1046, %v1049
      %v1051 = vsel %vm1011, %v1041, %v1050
      %v1053 = vshrl.u32 %v860, 16
      %v1055 = vrot.slane %v1053, 1
      %v1056 = vshll.u32 %v860, 16
      %v1058 = vrot.slane %v1056, 2
      %v1059 = vor.u32 %v1055, %v1058
      %v1060 = vsel %vm1011, %v1050, %v1059
      %v1065 = vunpack.c.l.b16 %v1007
      %v1066 = vunpack.c.l.b16 %v1008
      %v1067 = vunpack.c.l.b16 %v1009
      %v1068 = vunpack.c.l.b16 %v1010
      %v1069 = vpack.c.b16 %v1066, %v1065
      %v1070 = vpack.c.b16 %v1068, %v1067
      %v1074 = vsel %vm395, %v1018, 0
      %v1077 = vsel %vm395, %v1022, 0
      %v1080 = vsel %vm395, %v1026, 0
      %v1083 = vsel %vm395, %v1030, 0
      %v1086 = vsel %vm395, %v1034, 0
      %v1089 = vsel %vm395, %v1038, 0
      %v1092 = vsel %vm395, %v1042, 0
      %v1095 = vsel %vm395, %v1051, 0
      %v1098 = vsel %vm395, %v1060, 0
      %1100 = vmatprep.subr.bf16.mxu0 0
      %1101 = vmatpush1.bf16.msra.mxu0 0
      %1102 = vmatprep.subr.bf16.mxu0 0
      %1103 = vmatpush1.bf16.msra.mxu0 0
      %1104 = vmatprep.subr.bf16.mxu0 0
      %1105 = vmatpush1.bf16.msra.mxu0 0
      %1106 = vmatprep.subr.bf16.mxu0 0
      %1107 = vmatpush1.bf16.msra.mxu0 0
      %1108 = vmatprep.subr.bf16.mxu0 0
      %1109 = vmatpush1.bf16.msra.mxu0 0
      %1110 = vmatprep.subr.bf16.mxu0 0
      %1111 = vmatpush1.bf16.msra.mxu0 0
      %1112 = vmatprep.subr.bf16.mxu0 0
      %1113 = vmatpush1.bf16.msra.mxu0 %v1070
      %1114 = vmatprep.subr.bf16.mxu0 0
      %1115 = vmatpush1.bf16.msra.mxu0 %v1069
      %1116 = vmatprep.subr.bf16.mxu0 0
      %1117 = vmatpush2.bf16.msra.mxu0 0
      %1118 = vmatprep.subr.bf16.mxu0 0
      %1119 = vmatpush2.bf16.msra.mxu0 0
      %1120 = vmatprep.subr.bf16.mxu0 0
      %1121 = vmatpush2.bf16.msra.mxu0 0
      %1122 = vmatprep.subr.bf16.mxu0 0
      %1123 = vmatpush2.bf16.msra.mxu0 0
      %1124 = vmatprep.subr.bf16.mxu0 0
      %1125 = vmatpush2.bf16.msra.mxu0 0
      %1126 = vmatprep.subr.bf16.mxu0 0
      %1127 = vmatpush2.bf16.msra.mxu0 0
      %1128 = vmatprep.subr.bf16.mxu0 0
      %1129 = vmatpush2.bf16.msra.mxu0 0
      %1130 = vmatprep.subr.bf16.mxu0 0
      %1131 = vmatpush2.bf16.msra.mxu0 0
      %1132 = vmatprep.mubr.bf16.mxu0 0
      %1133 = vmatmul.mubr.bf16.gmra.mxu0 %v1074
      %v1134 = vpop.f32.mrf.mxu0
      %v1135 = vadd.f32 0.0, %v1134
      %v1136 = vpop.f32.mrf.mxu0
      %v1137 = vpop.f32.mrf.mxu0
      %v1138 = vadd.f32 0.0, %v1137
      %v1139 = vpop.f32.mrf.mxu0
      %1140 = vmatprep.mubr.bf16.mxu0 0
      %1141 = vmatmul.mubr.bf16.gmra.mxu0 %v1077
      %v1142 = vpop.f32.mrf.mxu0
      %v1143 = vadd.f32 0.0, %v1142
      %v1144 = vpop.f32.mrf.mxu0
      %v1145 = vpop.f32.mrf.mxu0
      %v1146 = vadd.f32 0.0, %v1145
      %v1147 = vpop.f32.mrf.mxu0
      %1148 = vmatprep.mubr.bf16.mxu0 0
      %1149 = vmatmul.mubr.bf16.gmra.mxu0 %v1080
      %v1150 = vpop.f32.mrf.mxu0
      %v1151 = vadd.f32 0.0, %v1150
      %v1152 = vpop.f32.mrf.mxu0
      %v1153 = vpop.f32.mrf.mxu0
      %v1154 = vadd.f32 0.0, %v1153
      %v1155 = vpop.f32.mrf.mxu0
      %1156 = vmatprep.mubr.bf16.mxu0 0
      %1157 = vmatmul.mubr.bf16.gmra.mxu0 %v1083
      %v1158 = vpop.f32.mrf.mxu0
      %v1159 = vadd.f32 0.0, %v1158
      %v1160 = vpop.f32.mrf.mxu0
      %v1161 = vpop.f32.mrf.mxu0
      %v1162 = vadd.f32 0.0, %v1161
      %v1163 = vpop.f32.mrf.mxu0
      %1164 = vmatprep.mubr.bf16.mxu0 0
      %1165 = vmatmul.mubr.bf16.gmra.mxu0 %v1086
      %v1166 = vpop.f32.mrf.mxu0
      %v1167 = vadd.f32 0.0, %v1166
      %v1168 = vpop.f32.mrf.mxu0
      %v1169 = vpop.f32.mrf.mxu0
      %v1170 = vadd.f32 0.0, %v1169
      %v1171 = vpop.f32.mrf.mxu0
      %1172 = vmatprep.mubr.bf16.mxu0 0
      %1173 = vmatmul.mubr.bf16.gmra.mxu0 %v1089
      %v1174 = vpop.f32.mrf.mxu0
      %v1175 = vadd.f32 0.0, %v1174
      %v1176 = vpop.f32.mrf.mxu0
      %v1177 = vpop.f32.mrf.mxu0
      %v1178 = vadd.f32 0.0, %v1177
      %v1179 = vpop.f32.mrf.mxu0
      %1180 = vmatprep.mubr.bf16.mxu0 0
      %1181 = vmatmul.mubr.bf16.gmra.mxu0 %v1092
      %v1182 = vpop.f32.mrf.mxu0
      %v1183 = vadd.f32 0.0, %v1182
      %v1184 = vpop.f32.mrf.mxu0
      %v1185 = vpop.f32.mrf.mxu0
      %v1186 = vadd.f32 0.0, %v1185
      %v1187 = vpop.f32.mrf.mxu0
      %1188 = vmatprep.mubr.bf16.mxu0 0
      %1189 = vmatmul.mubr.bf16.gmra.mxu0 %v1095
      %v1190 = vpop.f32.mrf.mxu0
      %v1191 = vadd.f32 0.0, %v1190
      %v1192 = vpop.f32.mrf.mxu0
      %v1193 = vpop.f32.mrf.mxu0
      %v1194 = vadd.f32 0.0, %v1193
      %v1195 = vpop.f32.mrf.mxu0
      %1196 = vmatprep.mubr.bf16.mxu0 0
      %1197 = vmatmul.mubr.bf16.gmra.mxu0 %v1098
      %v1198 = vpop.f32.mrf.mxu0
      %v1199 = vadd.f32 0.0, %v1198
      %v1200 = vpop.f32.mrf.mxu0
      %v1201 = vpop.f32.mrf.mxu0
      %v1202 = vadd.f32 0.0, %v1201
      %v1203 = vpop.f32.mrf.mxu0
      %1204 = vdwg.mxu0
      %v1205 = vadd.f32 %v988, %v1135
      %v1206 = vadd.f32 %v989, %v1138
      %v1207 = vadd.f32 %v990, %v1143
      %v1208 = vadd.f32 %v991, %v1146
      %v1209 = vadd.f32 %v992, %v1151
      %v1210 = vadd.f32 %v993, %v1154
      %v1211 = vadd.f32 %v994, %v1159
      %v1212 = vadd.f32 %v995, %v1162
      %v1213 = vadd.f32 %v996, %v1167
      %v1214 = vadd.f32 %v997, %v1170
      %v1215 = vadd.f32 %v998, %v1175
      %v1216 = vadd.f32 %v999, %v1178
      %v1217 = vadd.f32 %v1000, %v1183
      %v1218 = vadd.f32 %v1001, %v1186
      %v1219 = vadd.f32 %v1002, %v1191
      %v1220 = vadd.f32 %v1003, %v1194
      %v1221 = vadd.f32 %v1004, %v1199
      %v1222 = vadd.f32 %v1005, %v1202
      %s1223 = scalar_lea.vmem %s1, 80
      %v1224 = vld [vmem:[%s1223] sm:$0xf]
      %v1225 = vld [vmem:[%s1223 + $0x4] sm:$0xf]
      %v1226 = vld [vmem:[%s1223 + $0x8] sm:$0xf]
      %v1227 = vld [vmem:[%s1223 + $0xc] sm:$0xf]
      %vm1228 = vcmask 1045504
      %v1229 = vrot.slane %v297, 2
      %v1230 = vrot.slane %v298, 2
      %v1231 = vsel %vm1228, %v1229, %v1230
      %v1232 = vrot.slane %v299, 2
      %v1233 = vsel %vm1228, %v1230, %v1232
      %v1234 = vrot.slane %v300, 2
      %v1235 = vsel %vm1228, %v1232, %v1234
      %v1236 = vrot.slane %v301, 2
      %v1237 = vsel %vm1228, %v1234, %v1236
      %v1238 = vrot.slane %v302, 2
      %v1239 = vsel %vm1228, %v1236, %v1238
      %v1240 = vrot.slane %v303, 2
      %v1241 = vsel %vm1228, %v1238, %v1240
      %v1242 = vrot.slane %v304, 2
      %v1243 = vsel %vm1228, %v1240, %v1242
      %v1244 = vrot.slane %v859, 2
      %v1245 = vsel %vm1228, %v1242, %v1244
      %v1246 = vrot.slane %v860, 2
      %v1247 = vsel %vm1228, %v1244, %v1246
      %v1252 = vunpack.c.l.b16 %v1224
      %v1253 = vunpack.c.l.b16 %v1225
      %v1254 = vunpack.c.l.b16 %v1226
      %v1255 = vunpack.c.l.b16 %v1227
      %v1256 = vpack.c.b16 %v1253, %v1252
      %v1257 = vpack.c.b16 %v1255, %v1254
      %v1261 = vsel %vm395, %v1231, 0
      %v1264 = vsel %vm395, %v1233, 0
      %v1267 = vsel %vm395, %v1235, 0
      %v1270 = vsel %vm395, %v1237, 0
      %v1273 = vsel %vm395, %v1239, 0
      %v1276 = vsel %vm395, %v1241, 0
      %v1279 = vsel %vm395, %v1243, 0
      %v1282 = vsel %vm395, %v1245, 0
      %v1285 = vsel %vm395, %v1247, 0
      %1287 = vmatprep.subr.bf16.mxu0 0
      %1288 = vmatpush1.bf16.msra.mxu0 0
      %1289 = vmatprep.subr.bf16.mxu0 0
      %1290 = vmatpush1.bf16.msra.mxu0 0
      %1291 = vmatprep.subr.bf16.mxu0 0
      %1292 = vmatpush1.bf16.msra.mxu0 0
      %1293 = vmatprep.subr.bf16.mxu0 0
      %1294 = vmatpush1.bf16.msra.mxu0 0
      %1295 = vmatprep.subr.bf16.mxu0 0
      %1296 = vmatpush1.bf16.msra.mxu0 0
      %1297 = vmatprep.subr.bf16.mxu0 0
      %1298 = vmatpush1.bf16.msra.mxu0 0
      %1299 = vmatprep.subr.bf16.mxu0 0
      %1300 = vmatpush1.bf16.msra.mxu0 %v1257
      %1301 = vmatprep.subr.bf16.mxu0 0
      %1302 = vmatpush1.bf16.msra.mxu0 %v1256
      %1303 = vmatprep.subr.bf16.mxu0 0
      %1304 = vmatpush2.bf16.msra.mxu0 0
      %1305 = vmatprep.subr.bf16.mxu0 0
      %1306 = vmatpush2.bf16.msra.mxu0 0
      %1307 = vmatprep.subr.bf16.mxu0 0
      %1308 = vmatpush2.bf16.msra.mxu0 0
      %1309 = vmatprep.subr.bf16.mxu0 0
      %1310 = vmatpush2.bf16.msra.mxu0 0
      %1311 = vmatprep.subr.bf16.mxu0 0
      %1312 = vmatpush2.bf16.msra.mxu0 0
      %1313 = vmatprep.subr.bf16.mxu0 0
      %1314 = vmatpush2.bf16.msra.mxu0 0
      %1315 = vmatprep.subr.bf16.mxu0 0
      %1316 = vmatpush2.bf16.msra.mxu0 0
      %1317 = vmatprep.subr.bf16.mxu0 0
      %1318 = vmatpush2.bf16.msra.mxu0 0
      %1319 = vmatprep.mubr.bf16.mxu0 0
      %1320 = vmatmul.mubr.bf16.gmra.mxu0 %v1261
      %v1321 = vpop.f32.mrf.mxu0
      %v1322 = vadd.f32 0.0, %v1321
      %v1323 = vpop.f32.mrf.mxu0
      %v1324 = vpop.f32.mrf.mxu0
      %v1325 = vadd.f32 0.0, %v1324
      %v1326 = vpop.f32.mrf.mxu0
      %1327 = vmatprep.mubr.bf16.mxu0 0
      %1328 = vmatmul.mubr.bf16.gmra.mxu0 %v1264
      %v1329 = vpop.f32.mrf.mxu0
      %v1330 = vadd.f32 0.0, %v1329
      %v1331 = vpop.f32.mrf.mxu0
      %v1332 = vpop.f32.mrf.mxu0
      %v1333 = vadd.f32 0.0, %v1332
      %v1334 = vpop.f32.mrf.mxu0
      %1335 = vmatprep.mubr.bf16.mxu0 0
      %1336 = vmatmul.mubr.bf16.gmra.mxu0 %v1267
      %v1337 = vpop.f32.mrf.mxu0
      %v1338 = vadd.f32 0.0, %v1337
      %v1339 = vpop.f32.mrf.mxu0
      %v1340 = vpop.f32.mrf.mxu0
      %v1341 = vadd.f32 0.0, %v1340
      %v1342 = vpop.f32.mrf.mxu0
      %1343 = vmatprep.mubr.bf16.mxu0 0
      %1344 = vmatmul.mubr.bf16.gmra.mxu0 %v1270
      %v1345 = vpop.f32.mrf.mxu0
      %v1346 = vadd.f32 0.0, %v1345
      %v1347 = vpop.f32.mrf.mxu0
      %v1348 = vpop.f32.mrf.mxu0
      %v1349 = vadd.f32 0.0, %v1348
      %v1350 = vpop.f32.mrf.mxu0
      %1351 = vmatprep.mubr.bf16.mxu0 0
      %1352 = vmatmul.mubr.bf16.gmra.mxu0 %v1273
      %v1353 = vpop.f32.mrf.mxu0
      %v1354 = vadd.f32 0.0, %v1353
      %v1355 = vpop.f32.mrf.mxu0
      %v1356 = vpop.f32.mrf.mxu0
      %v1357 = vadd.f32 0.0, %v1356
      %v1358 = vpop.f32.mrf.mxu0
      %1359 = vmatprep.mubr.bf16.mxu0 0
      %1360 = vmatmul.mubr.bf16.gmra.mxu0 %v1276
      %v1361 = vpop.f32.mrf.mxu0
      %v1362 = vadd.f32 0.0, %v1361
      %v1363 = vpop.f32.mrf.mxu0
      %v1364 = vpop.f32.mrf.mxu0
      %v1365 = vadd.f32 0.0, %v1364
      %v1366 = vpop.f32.mrf.mxu0
      %1367 = vmatprep.mubr.bf16.mxu0 0
      %1368 = vmatmul.mubr.bf16.gmra.mxu0 %v1279
      %v1369 = vpop.f32.mrf.mxu0
      %v1370 = vadd.f32 0.0, %v1369
      %v1371 = vpop.f32.mrf.mxu0
      %v1372 = vpop.f32.mrf.mxu0
      %v1373 = vadd.f32 0.0, %v1372
      %v1374 = vpop.f32.mrf.mxu0
      %1375 = vmatprep.mubr.bf16.mxu0 0
      %1376 = vmatmul.mubr.bf16.gmra.mxu0 %v1282
      %v1377 = vpop.f32.mrf.mxu0
      %v1378 = vadd.f32 0.0, %v1377
      %v1379 = vpop.f32.mrf.mxu0
      %v1380 = vpop.f32.mrf.mxu0
      %v1381 = vadd.f32 0.0, %v1380
      %v1382 = vpop.f32.mrf.mxu0
      %1383 = vmatprep.mubr.bf16.mxu0 0
      %1384 = vmatmul.mubr.bf16.gmra.mxu0 %v1285
      %v1385 = vpop.f32.mrf.mxu0
      %v1386 = vadd.f32 0.0, %v1385
      %v1387 = vpop.f32.mrf.mxu0
      %v1388 = vpop.f32.mrf.mxu0
      %v1389 = vadd.f32 0.0, %v1388
      %v1390 = vpop.f32.mrf.mxu0
      %1391 = vdwg.mxu0
      %v1392 = vadd.f32 %v1205, %v1322
      %v1393 = vadd.f32 %v1206, %v1325
      %v1394 = vadd.f32 %v1207, %v1330
      %v1395 = vadd.f32 %v1208, %v1333
      %v1396 = vadd.f32 %v1209, %v1338
      %v1397 = vadd.f32 %v1210, %v1341
      %v1398 = vadd.f32 %v1211, %v1346
      %v1399 = vadd.f32 %v1212, %v1349
      %v1400 = vadd.f32 %v1213, %v1354
      %v1401 = vadd.f32 %v1214, %v1357
      %v1402 = vadd.f32 %v1215, %v1362
      %v1403 = vadd.f32 %v1216, %v1365
      %v1404 = vadd.f32 %v1217, %v1370
      %v1405 = vadd.f32 %v1218, %v1373
      %v1406 = vadd.f32 %v1219, %v1378
      %v1407 = vadd.f32 %v1220, %v1381
      %v1408 = vadd.f32 %v1221, %v1386
      %v1409 = vadd.f32 %v1222, %v1389
      %s1410 = scalar_lea.vmem %s1, 96
      %v1411 = vld [vmem:[%s1410] sm:$0xf]
      %v1412 = vld [vmem:[%s1410 + $0x4] sm:$0xf]
      %v1413 = vld [vmem:[%s1410 + $0x8] sm:$0xf]
      %v1414 = vld [vmem:[%s1410 + $0xc] sm:$0xf]
      %v1417 = vunpack.c.l.b16 %v247
      %v1418 = vunpack.c.l.b16 %v248
      %v1419 = vpack.c.b16 %v1417, %v858
      %v1420 = vpack.c.b16 %v1418, %v1418
      %v1421 = vrot.slane %v1419, 2
      %v1422 = vsel %vm1228, %v1244, %v1421
      %v1423 = vrot.slane %v1420, 2
      %v1424 = vsel %vm1228, %v1421, %v1423
      %v1429 = vunpack.c.l.b16 %v1411
      %v1430 = vunpack.c.l.b16 %v1412
      %v1431 = vunpack.c.l.b16 %v1413
      %v1432 = vunpack.c.l.b16 %v1414
      %v1433 = vpack.c.b16 %v1430, %v1429
      %v1434 = vpack.c.b16 %v1432, %v1431
      %v1438 = vsel %vm395, %v1422, 0
      %v1441 = vsel %vm395, %v1424, 0
      %1443 = vmatprep.subr.bf16.mxu0 0
      %1444 = vmatpush1.bf16.msra.mxu0 0
      %1445 = vmatprep.subr.bf16.mxu0 0
      %1446 = vmatpush1.bf16.msra.mxu0 0
      %1447 = vmatprep.subr.bf16.mxu0 0
      %1448 = vmatpush1.bf16.msra.mxu0 0
      %1449 = vmatprep.subr.bf16.mxu0 0
      %1450 = vmatpush1.bf16.msra.mxu0 0
      %1451 = vmatprep.subr.bf16.mxu0 0
      %1452 = vmatpush1.bf16.msra.mxu0 0
      %1453 = vmatprep.subr.bf16.mxu0 0
      %1454 = vmatpush1.bf16.msra.mxu0 0
      %1455 = vmatprep.subr.bf16.mxu0 0
      %1456 = vmatpush1.bf16.msra.mxu0 %v1434
      %1457 = vmatprep.subr.bf16.mxu0 0
      %1458 = vmatpush1.bf16.msra.mxu0 %v1433
      %1459 = vmatprep.subr.bf16.mxu0 0
      %1460 = vmatpush2.bf16.msra.mxu0 0
      %1461 = vmatprep.subr.bf16.mxu0 0
      %1462 = vmatpush2.bf16.msra.mxu0 0
      %1463 = vmatprep.subr.bf16.mxu0 0
      %1464 = vmatpush2.bf16.msra.mxu0 0
      %1465 = vmatprep.subr.bf16.mxu0 0
      %1466 = vmatpush2.bf16.msra.mxu0 0
      %1467 = vmatprep.subr.bf16.mxu0 0
      %1468 = vmatpush2.bf16.msra.mxu0 0
      %1469 = vmatprep.subr.bf16.mxu0 0
      %1470 = vmatpush2.bf16.msra.mxu0 0
      %1471 = vmatprep.subr.bf16.mxu0 0
      %1472 = vmatpush2.bf16.msra.mxu0 0
      %1473 = vmatprep.subr.bf16.mxu0 0
      %1474 = vmatpush2.bf16.msra.mxu0 0
      %1475 = vmatprep.mubr.bf16.mxu0 0
      %1476 = vmatmul.mubr.bf16.gmra.mxu0 %v1264
      %v1477 = vpop.f32.mrf.mxu0
      %v1478 = vadd.f32 0.0, %v1477
      %v1479 = vpop.f32.mrf.mxu0
      %v1480 = vpop.f32.mrf.mxu0
      %v1481 = vadd.f32 0.0, %v1480
      %v1482 = vpop.f32.mrf.mxu0
      %1483 = vmatprep.mubr.bf16.mxu0 0
      %1484 = vmatmul.mubr.bf16.gmra.mxu0 %v1267
      %v1485 = vpop.f32.mrf.mxu0
      %v1486 = vadd.f32 0.0, %v1485
      %v1487 = vpop.f32.mrf.mxu0
      %v1488 = vpop.f32.mrf.mxu0
      %v1489 = vadd.f32 0.0, %v1488
      %v1490 = vpop.f32.mrf.mxu0
      %1491 = vmatprep.mubr.bf16.mxu0 0
      %1492 = vmatmul.mubr.bf16.gmra.mxu0 %v1270
      %v1493 = vpop.f32.mrf.mxu0
      %v1494 = vadd.f32 0.0, %v1493
      %v1495 = vpop.f32.mrf.mxu0
      %v1496 = vpop.f32.mrf.mxu0
      %v1497 = vadd.f32 0.0, %v1496
      %v1498 = vpop.f32.mrf.mxu0
      %1499 = vmatprep.mubr.bf16.mxu0 0
      %1500 = vmatmul.mubr.bf16.gmra.mxu0 %v1273
      %v1501 = vpop.f32.mrf.mxu0
      %v1502 = vadd.f32 0.0, %v1501
      %v1503 = vpop.f32.mrf.mxu0
      %v1504 = vpop.f32.mrf.mxu0
      %v1505 = vadd.f32 0.0, %v1504
      %v1506 = vpop.f32.mrf.mxu0
      %1507 = vmatprep.mubr.bf16.mxu0 0
      %1508 = vmatmul.mubr.bf16.gmra.mxu0 %v1276
      %v1509 = vpop.f32.mrf.mxu0
      %v1510 = vadd.f32 0.0, %v1509
      %v1511 = vpop.f32.mrf.mxu0
      %v1512 = vpop.f32.mrf.mxu0
      %v1513 = vadd.f32 0.0, %v1512
      %v1514 = vpop.f32.mrf.mxu0
      %1515 = vmatprep.mubr.bf16.mxu0 0
      %1516 = vmatmul.mubr.bf16.gmra.mxu0 %v1279
      %v1517 = vpop.f32.mrf.mxu0
      %v1518 = vadd.f32 0.0, %v1517
      %v1519 = vpop.f32.mrf.mxu0
      %v1520 = vpop.f32.mrf.mxu0
      %v1521 = vadd.f32 0.0, %v1520
      %v1522 = vpop.f32.mrf.mxu0
      %1523 = vmatprep.mubr.bf16.mxu0 0
      %1524 = vmatmul.mubr.bf16.gmra.mxu0 %v1282
      %v1525 = vpop.f32.mrf.mxu0
      %v1526 = vadd.f32 0.0, %v1525
      %v1527 = vpop.f32.mrf.mxu0
      %v1528 = vpop.f32.mrf.mxu0
      %v1529 = vadd.f32 0.0, %v1528
      %v1530 = vpop.f32.mrf.mxu0
      %1531 = vmatprep.mubr.bf16.mxu0 0
      %1532 = vmatmul.mubr.bf16.gmra.mxu0 %v1438
      %v1533 = vpop.f32.mrf.mxu0
      %v1534 = vadd.f32 0.0, %v1533
      %v1535 = vpop.f32.mrf.mxu0
      %v1536 = vpop.f32.mrf.mxu0
      %v1537 = vadd.f32 0.0, %v1536
      %v1538 = vpop.f32.mrf.mxu0
      %1539 = vmatprep.mubr.bf16.mxu0 0
      %1540 = vmatmul.mubr.bf16.gmra.mxu0 %v1441
      %v1541 = vpop.f32.mrf.mxu0
      %v1542 = vadd.f32 0.0, %v1541
      %v1543 = vpop.f32.mrf.mxu0
      %v1544 = vpop.f32.mrf.mxu0
      %v1545 = vadd.f32 0.0, %v1544
      %v1546 = vpop.f32.mrf.mxu0
      %1547 = vdwg.mxu0
      %v1548 = vadd.f32 %v1392, %v1478
      %v1549 = vadd.f32 %v1393, %v1481
      %v1550 = vadd.f32 %v1394, %v1486
      %v1551 = vadd.f32 %v1395, %v1489
      %v1552 = vadd.f32 %v1396, %v1494
      %v1553 = vadd.f32 %v1397, %v1497
      %v1554 = vadd.f32 %v1398, %v1502
      %v1555 = vadd.f32 %v1399, %v1505
      %v1556 = vadd.f32 %v1400, %v1510
      %v1557 = vadd.f32 %v1401, %v1513
      %v1558 = vadd.f32 %v1402, %v1518
      %v1559 = vadd.f32 %v1403, %v1521
      %v1560 = vadd.f32 %v1404, %v1526
      %v1561 = vadd.f32 %v1405, %v1529
      %v1562 = vadd.f32 %v1406, %v1534
      %v1563 = vadd.f32 %v1407, %v1537
      %v1564 = vadd.f32 %v1408, %v1542
      %v1565 = vadd.f32 %v1409, %v1545
      %s1566 = scalar_lea.vmem %s1, 112
      %v1567 = vld [vmem:[%s1566] sm:$0xf]
      %v1568 = vld [vmem:[%s1566 + $0x4] sm:$0xf]
      %v1569 = vld [vmem:[%s1566 + $0x8] sm:$0xf]
      %v1570 = vld [vmem:[%s1566 + $0xc] sm:$0xf]
      %vm1571 = vsmask.f32 5376
      %v1572 = vrot.slane %v327, 2
      %v1573 = vrot.slane %v323, 3
      %v1574 = vor.u32 %v1572, %v1573
      %v1575 = vrot.slane %v335, 2
      %v1576 = vrot.slane %v331, 3
      %v1577 = vor.u32 %v1575, %v1576
      %v1578 = vsel %vm1571, %v1574, %v1577
      %v1579 = vrot.slane %v343, 2
      %v1580 = vrot.slane %v339, 3
      %v1581 = vor.u32 %v1579, %v1580
      %v1582 = vsel %vm1571, %v1577, %v1581
      %v1583 = vrot.slane %v351, 2
      %v1584 = vrot.slane %v347, 3
      %v1585 = vor.u32 %v1583, %v1584
      %v1586 = vsel %vm1571, %v1581, %v1585
      %v1587 = vrot.slane %v359, 2
      %v1588 = vrot.slane %v355, 3
      %v1589 = vor.u32 %v1587, %v1588
      %v1590 = vsel %vm1571, %v1585, %v1589
      %v1591 = vrot.slane %v367, 2
      %v1592 = vrot.slane %v363, 3
      %v1593 = vor.u32 %v1591, %v1592
      %v1594 = vsel %vm1571, %v1589, %v1593
      %v1595 = vrot.slane %v375, 2
      %v1596 = vrot.slane %v371, 3
      %v1597 = vor.u32 %v1595, %v1596
      %v1598 = vsel %vm1571, %v1593, %v1597
      %v1599 = vrot.slane %v1044, 2
      %v1600 = vrot.slane %v1047, 3
      %v1601 = vor.u32 %v1599, %v1600
      %v1602 = vsel %vm1571, %v1597, %v1601
      %v1604 = vshrl.u32 %v1419, 16
      %v1606 = vrot.slane %v1604, 2
      %v1607 = vshll.u32 %v1419, 16
      %v1609 = vrot.slane %v1607, 3
      %v1610 = vor.u32 %v1606, %v1609
      %v1611 = vsel %vm1571, %v1601, %v1610
      %v1613 = vshrl.u32 %v1420, 16
      %v1615 = vrot.slane %v1613, 2
      %v1616 = vshll.u32 %v1420, 16
      %v1618 = vrot.slane %v1616, 3
      %v1619 = vor.u32 %v1615, %v1618
      %v1620 = vsel %vm1571, %v1610, %v1619
      %v1625 = vunpack.c.l.b16 %v1567
      %v1626 = vunpack.c.l.b16 %v1568
      %v1627 = vunpack.c.l.b16 %v1569
      %v1628 = vunpack.c.l.b16 %v1570
      %v1629 = vpack.c.b16 %v1626, %v1625
      %v1630 = vpack.c.b16 %v1628, %v1627
      %v1634 = vsel %vm395, %v1578, 0
      %v1637 = vsel %vm395, %v1582, 0
      %v1640 = vsel %vm395, %v1586, 0
      %v1643 = vsel %vm395, %v1590, 0
      %v1646 = vsel %vm395, %v1594, 0
      %v1649 = vsel %vm395, %v1598, 0
      %v1652 = vsel %vm395, %v1602, 0
      %v1655 = vsel %vm395, %v1611, 0
      %v1658 = vsel %vm395, %v1620, 0
      %1660 = vmatprep.subr.bf16.mxu0 0
      %1661 = vmatpush1.bf16.msra.mxu0 0
      %1662 = vmatprep.subr.bf16.mxu0 0
      %1663 = vmatpush1.bf16.msra.mxu0 0
      %1664 = vmatprep.subr.bf16.mxu0 0
      %1665 = vmatpush1.bf16.msra.mxu0 0
      %1666 = vmatprep.subr.bf16.mxu0 0
      %1667 = vmatpush1.bf16.msra.mxu0 0
      %1668 = vmatprep.subr.bf16.mxu0 0
      %1669 = vmatpush1.bf16.msra.mxu0 0
      %1670 = vmatprep.subr.bf16.mxu0 0
      %1671 = vmatpush1.bf16.msra.mxu0 0
      %1672 = vmatprep.subr.bf16.mxu0 0
      %1673 = vmatpush1.bf16.msra.mxu0 %v1630
      %1674 = vmatprep.subr.bf16.mxu0 0
      %1675 = vmatpush1.bf16.msra.mxu0 %v1629
      %1676 = vmatprep.subr.bf16.mxu0 0
      %1677 = vmatpush2.bf16.msra.mxu0 0
      %1678 = vmatprep.subr.bf16.mxu0 0
      %1679 = vmatpush2.bf16.msra.mxu0 0
      %1680 = vmatprep.subr.bf16.mxu0 0
      %1681 = vmatpush2.bf16.msra.mxu0 0
      %1682 = vmatprep.subr.bf16.mxu0 0
      %1683 = vmatpush2.bf16.msra.mxu0 0
      %1684 = vmatprep.subr.bf16.mxu0 0
      %1685 = vmatpush2.bf16.msra.mxu0 0
      %1686 = vmatprep.subr.bf16.mxu0 0
      %1687 = vmatpush2.bf16.msra.mxu0 0
      %1688 = vmatprep.subr.bf16.mxu0 0
      %1689 = vmatpush2.bf16.msra.mxu0 0
      %1690 = vmatprep.subr.bf16.mxu0 0
      %1691 = vmatpush2.bf16.msra.mxu0 0
      %1692 = vmatprep.mubr.bf16.mxu0 0
      %1693 = vmatmul.mubr.bf16.gmra.mxu0 %v1634
      %v1694 = vpop.f32.mrf.mxu0
      %v1695 = vadd.f32 0.0, %v1694
      %v1696 = vpop.f32.mrf.mxu0
      %v1697 = vpop.f32.mrf.mxu0
      %v1698 = vadd.f32 0.0, %v1697
      %v1699 = vpop.f32.mrf.mxu0
      %1700 = vmatprep.mubr.bf16.mxu0 0
      %1701 = vmatmul.mubr.bf16.gmra.mxu0 %v1637
      %v1702 = vpop.f32.mrf.mxu0
      %v1703 = vadd.f32 0.0, %v1702
      %v1704 = vpop.f32.mrf.mxu0
      %v1705 = vpop.f32.mrf.mxu0
      %v1706 = vadd.f32 0.0, %v1705
      %v1707 = vpop.f32.mrf.mxu0
      %1708 = vmatprep.mubr.bf16.mxu0 0
      %1709 = vmatmul.mubr.bf16.gmra.mxu0 %v1640
      %v1710 = vpop.f32.mrf.mxu0
      %v1711 = vadd.f32 0.0, %v1710
      %v1712 = vpop.f32.mrf.mxu0
      %v1713 = vpop.f32.mrf.mxu0
      %v1714 = vadd.f32 0.0, %v1713
      %v1715 = vpop.f32.mrf.mxu0
      %1716 = vmatprep.mubr.bf16.mxu0 0
      %1717 = vmatmul.mubr.bf16.gmra.mxu0 %v1643
      %v1718 = vpop.f32.mrf.mxu0
      %v1719 = vadd.f32 0.0, %v1718
      %v1720 = vpop.f32.mrf.mxu0
      %v1721 = vpop.f32.mrf.mxu0
      %v1722 = vadd.f32 0.0, %v1721
      %v1723 = vpop.f32.mrf.mxu0
      %1724 = vmatprep.mubr.bf16.mxu0 0
      %1725 = vmatmul.mubr.bf16.gmra.mxu0 %v1646
      %v1726 = vpop.f32.mrf.mxu0
      %v1727 = vadd.f32 0.0, %v1726
      %v1728 = vpop.f32.mrf.mxu0
      %v1729 = vpop.f32.mrf.mxu0
      %v1730 = vadd.f32 0.0, %v1729
      %v1731 = vpop.f32.mrf.mxu0
      %1732 = vmatprep.mubr.bf16.mxu0 0
      %1733 = vmatmul.mubr.bf16.gmra.mxu0 %v1649
      %v1734 = vpop.f32.mrf.mxu0
      %v1735 = vadd.f32 0.0, %v1734
      %v1736 = vpop.f32.mrf.mxu0
      %v1737 = vpop.f32.mrf.mxu0
      %v1738 = vadd.f32 0.0, %v1737
      %v1739 = vpop.f32.mrf.mxu0
      %1740 = vmatprep.mubr.bf16.mxu0 0
      %1741 = vmatmul.mubr.bf16.gmra.mxu0 %v1652
      %v1742 = vpop.f32.mrf.mxu0
      %v1743 = vadd.f32 0.0, %v1742
      %v1744 = vpop.f32.mrf.mxu0
      %v1745 = vpop.f32.mrf.mxu0
      %v1746 = vadd.f32 0.0, %v1745
      %v1747 = vpop.f32.mrf.mxu0
      %1748 = vmatprep.mubr.bf16.mxu0 0
      %1749 = vmatmul.mubr.bf16.gmra.mxu0 %v1655
      %v1750 = vpop.f32.mrf.mxu0
      %v1751 = vadd.f32 0.0, %v1750
      %v1752 = vpop.f32.mrf.mxu0
      %v1753 = vpop.f32.mrf.mxu0
      %v1754 = vadd.f32 0.0, %v1753
      %v1755 = vpop.f32.mrf.mxu0
      %1756 = vmatprep.mubr.bf16.mxu0 0
      %1757 = vmatmul.mubr.bf16.gmra.mxu0 %v1658
      %v1758 = vpop.f32.mrf.mxu0
      %v1759 = vadd.f32 0.0, %v1758
      %v1760 = vpop.f32.mrf.mxu0
      %v1761 = vpop.f32.mrf.mxu0
      %v1762 = vadd.f32 0.0, %v1761
      %v1763 = vpop.f32.mrf.mxu0
      %1764 = vdwg.mxu0
      %v1765 = vadd.f32 %v1548, %v1695
      %v1766 = vadd.f32 %v1549, %v1698
      %v1767 = vadd.f32 %v1550, %v1703
      %v1768 = vadd.f32 %v1551, %v1706
      %v1769 = vadd.f32 %v1552, %v1711
      %v1770 = vadd.f32 %v1553, %v1714
      %v1771 = vadd.f32 %v1554, %v1719
      %v1772 = vadd.f32 %v1555, %v1722
      %v1773 = vadd.f32 %v1556, %v1727
      %v1774 = vadd.f32 %v1557, %v1730
      %v1775 = vadd.f32 %v1558, %v1735
      %v1776 = vadd.f32 %v1559, %v1738
      %v1777 = vadd.f32 %v1560, %v1743
      %v1778 = vadd.f32 %v1561, %v1746
      %v1779 = vadd.f32 %v1562, %v1751
      %v1780 = vadd.f32 %v1563, %v1754
      %v1781 = vadd.f32 %v1564, %v1759
      %v1782 = vadd.f32 %v1565, %v1762
      %s1783 = scalar_lea.vmem %s1, 128
      %v1784 = vld [vmem:[%s1783] sm:$0xf]
      %v1785 = vld [vmem:[%s1783 + $0x4] sm:$0xf]
      %v1786 = vld [vmem:[%s1783 + $0x8] sm:$0xf]
      %v1787 = vld [vmem:[%s1783 + $0xc] sm:$0xf]
      %vm1788 = vcmask 1044480
      %v1789 = vrot.slane %v298, 3
      %v1790 = vrot.slane %v299, 3
      %v1791 = vsel %vm1788, %v1789, %v1790
      %v1792 = vrot.slane %v300, 3
      %v1793 = vsel %vm1788, %v1790, %v1792
      %v1794 = vrot.slane %v301, 3
      %v1795 = vsel %vm1788, %v1792, %v1794
      %v1796 = vrot.slane %v302, 3
      %v1797 = vsel %vm1788, %v1794, %v1796
      %v1798 = vrot.slane %v303, 3
      %v1799 = vsel %vm1788, %v1796, %v1798
      %v1800 = vrot.slane %v304, 3
      %v1801 = vsel %vm1788, %v1798, %v1800
      %v1802 = vrot.slane %v859, 3
      %v1803 = vsel %vm1788, %v1800, %v1802
      %v1804 = vrot.slane %v1419, 3
      %v1805 = vsel %vm1788, %v1802, %v1804
      %v1806 = vrot.slane %v1420, 3
      %v1807 = vsel %vm1788, %v1804, %v1806
      %v1812 = vunpack.c.l.b16 %v1784
      %v1813 = vunpack.c.l.b16 %v1785
      %v1814 = vunpack.c.l.b16 %v1786
      %v1815 = vunpack.c.l.b16 %v1787
      %v1816 = vpack.c.b16 %v1813, %v1812
      %v1817 = vpack.c.b16 %v1815, %v1814
      %v1821 = vsel %vm395, %v1791, 0
      %v1824 = vsel %vm395, %v1793, 0
      %v1827 = vsel %vm395, %v1795, 0
      %v1830 = vsel %vm395, %v1797, 0
      %v1833 = vsel %vm395, %v1799, 0
      %v1836 = vsel %vm395, %v1801, 0
      %v1839 = vsel %vm395, %v1803, 0
      %v1842 = vsel %vm395, %v1805, 0
      %v1845 = vsel %vm395, %v1807, 0
      %1847 = vmatprep.subr.bf16.mxu0 0
      %1848 = vmatpush1.bf16.msra.mxu0 0
      %1849 = vmatprep.subr.bf16.mxu0 0
      %1850 = vmatpush1.bf16.msra.mxu0 0
      %1851 = vmatprep.subr.bf16.mxu0 0
      %1852 = vmatpush1.bf16.msra.mxu0 0
      %1853 = vmatprep.subr.bf16.mxu0 0
      %1854 = vmatpush1.bf16.msra.mxu0 0
      %1855 = vmatprep.subr.bf16.mxu0 0
      %1856 = vmatpush1.bf16.msra.mxu0 0
      %1857 = vmatprep.subr.bf16.mxu0 0
      %1858 = vmatpush1.bf16.msra.mxu0 0
      %1859 = vmatprep.subr.bf16.mxu0 0
      %1860 = vmatpush1.bf16.msra.mxu0 %v1817
      %1861 = vmatprep.subr.bf16.mxu0 0
      %1862 = vmatpush1.bf16.msra.mxu0 %v1816
      %1863 = vmatprep.subr.bf16.mxu0 0
      %1864 = vmatpush2.bf16.msra.mxu0 0
      %1865 = vmatprep.subr.bf16.mxu0 0
      %1866 = vmatpush2.bf16.msra.mxu0 0
      %1867 = vmatprep.subr.bf16.mxu0 0
      %1868 = vmatpush2.bf16.msra.mxu0 0
      %1869 = vmatprep.subr.bf16.mxu0 0
      %1870 = vmatpush2.bf16.msra.mxu0 0
      %1871 = vmatprep.subr.bf16.mxu0 0
      %1872 = vmatpush2.bf16.msra.mxu0 0
      %1873 = vmatprep.subr.bf16.mxu0 0
      %1874 = vmatpush2.bf16.msra.mxu0 0
      %1875 = vmatprep.subr.bf16.mxu0 0
      %1876 = vmatpush2.bf16.msra.mxu0 0
      %1877 = vmatprep.subr.bf16.mxu0 0
      %1878 = vmatpush2.bf16.msra.mxu0 0
      %1879 = vmatprep.mubr.bf16.mxu0 0
      %1880 = vmatmul.mubr.bf16.gmra.mxu0 %v1821
      %v1881 = vpop.f32.mrf.mxu0
      %v1882 = vadd.f32 0.0, %v1881
      %v1883 = vpop.f32.mrf.mxu0
      %v1884 = vpop.f32.mrf.mxu0
      %v1885 = vadd.f32 0.0, %v1884
      %v1886 = vpop.f32.mrf.mxu0
      %1887 = vmatprep.mubr.bf16.mxu0 0
      %1888 = vmatmul.mubr.bf16.gmra.mxu0 %v1824
      %v1889 = vpop.f32.mrf.mxu0
      %v1890 = vadd.f32 0.0, %v1889
      %v1891 = vpop.f32.mrf.mxu0
      %v1892 = vpop.f32.mrf.mxu0
      %v1893 = vadd.f32 0.0, %v1892
      %v1894 = vpop.f32.mrf.mxu0
      %1895 = vmatprep.mubr.bf16.mxu0 0
      %1896 = vmatmul.mubr.bf16.gmra.mxu0 %v1827
      %v1897 = vpop.f32.mrf.mxu0
      %v1898 = vadd.f32 0.0, %v1897
      %v1899 = vpop.f32.mrf.mxu0
      %v1900 = vpop.f32.mrf.mxu0
      %v1901 = vadd.f32 0.0, %v1900
      %v1902 = vpop.f32.mrf.mxu0
      %1903 = vmatprep.mubr.bf16.mxu0 0
      %1904 = vmatmul.mubr.bf16.gmra.mxu0 %v1830
      %v1905 = vpop.f32.mrf.mxu0
      %v1906 = vadd.f32 0.0, %v1905
      %v1907 = vpop.f32.mrf.mxu0
      %v1908 = vpop.f32.mrf.mxu0
      %v1909 = vadd.f32 0.0, %v1908
      %v1910 = vpop.f32.mrf.mxu0
      %1911 = vmatprep.mubr.bf16.mxu0 0
      %1912 = vmatmul.mubr.bf16.gmra.mxu0 %v1833
      %v1913 = vpop.f32.mrf.mxu0
      %v1914 = vadd.f32 0.0, %v1913
      %v1915 = vpop.f32.mrf.mxu0
      %v1916 = vpop.f32.mrf.mxu0
      %v1917 = vadd.f32 0.0, %v1916
      %v1918 = vpop.f32.mrf.mxu0
      %1919 = vmatprep.mubr.bf16.mxu0 0
      %1920 = vmatmul.mubr.bf16.gmra.mxu0 %v1836
      %v1921 = vpop.f32.mrf.mxu0
      %v1922 = vadd.f32 0.0, %v1921
      %v1923 = vpop.f32.mrf.mxu0
      %v1924 = vpop.f32.mrf.mxu0
      %v1925 = vadd.f32 0.0, %v1924
      %v1926 = vpop.f32.mrf.mxu0
      %1927 = vmatprep.mubr.bf16.mxu0 0
      %1928 = vmatmul.mubr.bf16.gmra.mxu0 %v1839
      %v1929 = vpop.f32.mrf.mxu0
      %v1930 = vadd.f32 0.0, %v1929
      %v1931 = vpop.f32.mrf.mxu0
      %v1932 = vpop.f32.mrf.mxu0
      %v1933 = vadd.f32 0.0, %v1932
      %v1934 = vpop.f32.mrf.mxu0
      %1935 = vmatprep.mubr.bf16.mxu0 0
      %1936 = vmatmul.mubr.bf16.gmra.mxu0 %v1842
      %v1937 = vpop.f32.mrf.mxu0
      %v1938 = vadd.f32 0.0, %v1937
      %v1939 = vpop.f32.mrf.mxu0
      %v1940 = vpop.f32.mrf.mxu0
      %v1941 = vadd.f32 0.0, %v1940
      %v1942 = vpop.f32.mrf.mxu0
      %1943 = vmatprep.mubr.bf16.mxu0 0
      %1944 = vmatmul.mubr.bf16.gmra.mxu0 %v1845
      %v1945 = vpop.f32.mrf.mxu0
      %v1946 = vadd.f32 0.0, %v1945
      %v1947 = vpop.f32.mrf.mxu0
      %v1948 = vpop.f32.mrf.mxu0
      %v1949 = vadd.f32 0.0, %v1948
      %v1950 = vpop.f32.mrf.mxu0
      %1951 = vdwg.mxu0
      %v1952 = vadd.f32 %v1765, %v1882
      %v1953 = vadd.f32 %v1766, %v1885
      %v1954 = vadd.f32 %v1767, %v1890
      %v1955 = vadd.f32 %v1768, %v1893
      %v1956 = vadd.f32 %v1769, %v1898
      %v1957 = vadd.f32 %v1770, %v1901
      %v1958 = vadd.f32 %v1771, %v1906
      %v1959 = vadd.f32 %v1772, %v1909
      %v1960 = vadd.f32 %v1773, %v1914
      %v1961 = vadd.f32 %v1774, %v1917
      %v1962 = vadd.f32 %v1775, %v1922
      %v1963 = vadd.f32 %v1776, %v1925
      %v1964 = vadd.f32 %v1777, %v1930
      %v1965 = vadd.f32 %v1778, %v1933
      %v1966 = vadd.f32 %v1779, %v1938
      %v1967 = vadd.f32 %v1780, %v1941
      %v1968 = vadd.f32 %v1781, %v1946
      %v1969 = vadd.f32 %v1782, %v1949
      %v1970 = vld [vmem:[%s2] sm:$0x1]
      %v1972 = vlaneseq
      %v1973 = vshrl.u32 %v1972, 7
      %v1974 = vsub.s32 0, %v1973
      %v1975 = vrot.slane %v1970, %v1974
      %v1977 = vadd.f32 %v1952, %v1975
      %v1978 = vadd.f32 %v1953, %v1975
      %v1979 = vadd.f32 %v1954, %v1975
      %v1980 = vadd.f32 %v1955, %v1975
      %v1981 = vadd.f32 %v1956, %v1975
      %v1982 = vadd.f32 %v1957, %v1975
      %v1983 = vadd.f32 %v1958, %v1975
      %v1984 = vadd.f32 %v1959, %v1975
      %v1985 = vadd.f32 %v1960, %v1975
      %v1986 = vadd.f32 %v1961, %v1975
      %v1987 = vadd.f32 %v1962, %v1975
      %v1988 = vadd.f32 %v1963, %v1975
      %v1989 = vadd.f32 %v1964, %v1975
      %v1990 = vadd.f32 %v1965, %v1975
      %v1991 = vadd.f32 %v1966, %v1975
      %v1992 = vadd.f32 %v1967, %v1975
      %v1993 = vadd.f32 %v1968, %v1975
      %v1994 = vadd.f32 %v1969, %v1975
      %v1995 = vmax.f32 %v1977, 0.0
      %v1996 = vmax.f32 %v1978, 0.0
      %v1997 = vmax.f32 %v1979, 0.0
      %v1998 = vmax.f32 %v1980, 0.0
      %v1999 = vmax.f32 %v1981, 0.0
      %v2000 = vmax.f32 %v1982, 0.0
      %v2001 = vmax.f32 %v1983, 0.0
      %v2002 = vmax.f32 %v1984, 0.0
      %v2003 = vmax.f32 %v1985, 0.0
      %v2004 = vmax.f32 %v1986, 0.0
      %v2005 = vmax.f32 %v1987, 0.0
      %v2006 = vmax.f32 %v1988, 0.0
      %v2007 = vmax.f32 %v1989, 0.0
      %v2008 = vmax.f32 %v1990, 0.0
      %v2009 = vmax.f32 %v1991, 0.0
      %v2010 = vmax.f32 %v1992, 0.0
      %v2011 = vmax.f32 %v1993, 0.0
      %v2012 = vmax.f32 %v1994, 0.0
      %v2013 = vpack.c.bf16 %v1996, %v1995
      %v2014 = vpack.c.bf16 %v1998, %v1997
      %v2015 = vpack.c.bf16 %v2000, %v1999
      %v2016 = vpack.c.bf16 %v2002, %v2001
      %v2017 = vpack.c.bf16 %v2004, %v2003
      %v2018 = vpack.c.bf16 %v2006, %v2005
      %v2019 = vpack.c.bf16 %v2008, %v2007
      %v2020 = vpack.c.bf16 %v2010, %v2009
      %v2021 = vpack.c.bf16 %v2012, %v2011
      %v2022 = vld [vmem:[%s3] sm:$0xf]
      %v2023 = vld [vmem:[%s4] sm:$0x1]
      %v2025 = vlaneseq
      %v2026 = vshrl.u32 %v2025, 7
      %v2027 = vsub.s32 0, %v2026
      %v2028 = vrot.slane %v2023, %v2027
      %vm2030 = vcmask 64512
      %v2032 = vsel %vm2030, %v2013, 0
      %v2035 = vsel %vm2030, %v2014, 0
      %v2038 = vsel %vm2030, %v2015, 0
      %v2041 = vsel %vm2030, %v2016, 0
      %v2044 = vsel %vm2030, %v2017, 0
      %v2047 = vsel %vm2030, %v2018, 0
      %v2050 = vsel %vm2030, %v2019, 0
      %v2053 = vsel %vm2030, %v2020, 0
      %v2056 = vsel %vm2030, %v2021, 0
      %vm2058 = vcmask 1043456
      %v2060 = vsel %vm2058, %v2022, 0
      %2062 = vmatprep.subr.bf16.mxu0 0
      %2063 = vmatpush1.bf16.msra.mxu0 0
      %2064 = vmatprep.subr.bf16.mxu0 0
      %2065 = vmatpush1.bf16.msra.mxu0 0
      %2066 = vmatprep.subr.bf16.mxu0 0
      %2067 = vmatpush1.bf16.msra.mxu0 0
      %2068 = vmatprep.subr.bf16.mxu0 0
      %2069 = vmatpush1.bf16.msra.mxu0 0
      %2070 = vmatprep.subr.bf16.mxu0 0
      %2071 = vmatpush1.bf16.msra.mxu0 0
      %2072 = vmatprep.subr.bf16.mxu0 0
      %2073 = vmatpush1.bf16.msra.mxu0 0
      %2074 = vmatprep.subr.bf16.mxu0 0
      %2075 = vmatpush1.bf16.msra.mxu0 0
      %2076 = vmatprep.subr.bf16.mxu0 0
      %2077 = vmatpush1.bf16.msra.mxu0 %v2060
      %2078 = vmatprep.subr.bf16.mxu0 0
      %2079 = vmatpush2.bf16.msra.mxu0 0
      %2080 = vmatprep.subr.bf16.mxu0 0
      %2081 = vmatpush2.bf16.msra.mxu0 0
      %2082 = vmatprep.subr.bf16.mxu0 0
      %2083 = vmatpush2.bf16.msra.mxu0 0
      %2084 = vmatprep.subr.bf16.mxu0 0
      %2085 = vmatpush2.bf16.msra.mxu0 0
      %2086 = vmatprep.subr.bf16.mxu0 0
      %2087 = vmatpush2.bf16.msra.mxu0 0
      %2088 = vmatprep.subr.bf16.mxu0 0
      %2089 = vmatpush2.bf16.msra.mxu0 0
      %2090 = vmatprep.subr.bf16.mxu0 0
      %2091 = vmatpush2.bf16.msra.mxu0 0
      %2092 = vmatprep.subr.bf16.mxu0 0
      %2093 = vmatpush2.bf16.msra.mxu0 0
      %2094 = vmatprep.mubr.bf16.mxu0 0
      %2095 = vmatmul.mubr.bf16.gmra.mxu0 %v2032
      %v2096 = vpop.f32.mrf.mxu0
      %v2097 = vadd.f32 %v2028, %v2096
      %v2098 = vpop.f32.mrf.mxu0
      %v2099 = vpop.f32.mrf.mxu0
      %v2100 = vadd.f32 %v2028, %v2099
      %v2101 = vpop.f32.mrf.mxu0
      %2102 = vmatprep.mubr.bf16.mxu0 0
      %2103 = vmatmul.mubr.bf16.gmra.mxu0 %v2035
      %v2104 = vpop.f32.mrf.mxu0
      %v2105 = vadd.f32 %v2028, %v2104
      %v2106 = vpop.f32.mrf.mxu0
      %v2107 = vpop.f32.mrf.mxu0
      %v2108 = vadd.f32 %v2028, %v2107
      %v2109 = vpop.f32.mrf.mxu0
      %2110 = vmatprep.mubr.bf16.mxu0 0
      %2111 = vmatmul.mubr.bf16.gmra.mxu0 %v2038
      %v2112 = vpop.f32.mrf.mxu0
      %v2113 = vadd.f32 %v2028, %v2112
      %v2114 = vpop.f32.mrf.mxu0
      %v2115 = vpop.f32.mrf.mxu0
      %v2116 = vadd.f32 %v2028, %v2115
      %v2117 = vpop.f32.mrf.mxu0
      %2118 = vmatprep.mubr.bf16.mxu0 0
      %2119 = vmatmul.mubr.bf16.gmra.mxu0 %v2041
      %v2120 = vpop.f32.mrf.mxu0
      %v2121 = vadd.f32 %v2028, %v2120
      %v2122 = vpop.f32.mrf.mxu0
      %v2123 = vpop.f32.mrf.mxu0
      %v2124 = vadd.f32 %v2028, %v2123
      %v2125 = vpop.f32.mrf.mxu0
      %2126 = vmatprep.mubr.bf16.mxu0 0
      %2127 = vmatmul.mubr.bf16.gmra.mxu0 %v2044
      %v2128 = vpop.f32.mrf.mxu0
      %v2129 = vadd.f32 %v2028, %v2128
      %v2130 = vpop.f32.mrf.mxu0
      %v2131 = vpop.f32.mrf.mxu0
      %v2132 = vadd.f32 %v2028, %v2131
      %v2133 = vpop.f32.mrf.mxu0
      %2134 = vmatprep.mubr.bf16.mxu0 0
      %2135 = vmatmul.mubr.bf16.gmra.mxu0 %v2047
      %v2136 = vpop.f32.mrf.mxu0
      %v2137 = vadd.f32 %v2028, %v2136
      %v2138 = vpop.f32.mrf.mxu0
      %v2139 = vpop.f32.mrf.mxu0
      %v2140 = vadd.f32 %v2028, %v2139
      %v2141 = vpop.f32.mrf.mxu0
      %2142 = vmatprep.mubr.bf16.mxu0 0
      %2143 = vmatmul.mubr.bf16.gmra.mxu0 %v2050
      %v2144 = vpop.f32.mrf.mxu0
      %v2145 = vadd.f32 %v2028, %v2144
      %v2146 = vpop.f32.mrf.mxu0
      %v2147 = vpop.f32.mrf.mxu0
      %v2148 = vadd.f32 %v2028, %v2147
      %v2149 = vpop.f32.mrf.mxu0
      %2150 = vmatprep.mubr.bf16.mxu0 0
      %2151 = vmatmul.mubr.bf16.gmra.mxu0 %v2053
      %v2152 = vpop.f32.mrf.mxu0
      %v2153 = vadd.f32 %v2028, %v2152
      %v2154 = vpop.f32.mrf.mxu0
      %v2155 = vpop.f32.mrf.mxu0
      %v2156 = vadd.f32 %v2028, %v2155
      %v2157 = vpop.f32.mrf.mxu0
      %2158 = vmatprep.mubr.bf16.mxu0 0
      %2159 = vmatmul.mubr.bf16.gmra.mxu0 %v2056
      %v2160 = vpop.f32.mrf.mxu0
      %v2161 = vadd.f32 %v2028, %v2160
      %v2162 = vpop.f32.mrf.mxu0
      %v2163 = vpop.f32.mrf.mxu0
      %v2164 = vadd.f32 %v2028, %v2163
      %v2165 = vpop.f32.mrf.mxu0
      %2166 = vdwg.mxu0
      %2167 = vst [vmem:[%s224] sm:$0xff] %v2097
      %2168 = vst [vmem:[%s224 + $0x8] sm:$0xff] %v2100
      %2169 = vst [vmem:[%s224 + $0x10] sm:$0xff] %v2105
      %2170 = vst [vmem:[%s224 + $0x18] sm:$0xff] %v2108
      %2171 = vst [vmem:[%s224 + $0x20] sm:$0xff] %v2113
      %2172 = vst [vmem:[%s224 + $0x28] sm:$0xff] %v2116
      %2173 = vst [vmem:[%s224 + $0x30] sm:$0xff] %v2121
      %2174 = vst [vmem:[%s224 + $0x38] sm:$0xff] %v2124
      %2175 = vst [vmem:[%s224 + $0x40] sm:$0xff] %v2129
      %2176 = vst [vmem:[%s224 + $0x48] sm:$0xff] %v2132
      %2177 = vst [vmem:[%s224 + $0x50] sm:$0xff] %v2137
      %2178 = vst [vmem:[%s224 + $0x58] sm:$0xff] %v2140
      %2179 = vst [vmem:[%s224 + $0x60] sm:$0xff] %v2145
      %2180 = vst [vmem:[%s224 + $0x68] sm:$0xff] %v2148
      %2181 = vst [vmem:[%s224 + $0x70] sm:$0xff] %v2153
      %2182 = vst [vmem:[%s224 + $0x78] sm:$0xff] %v2156
      %2183 = vst [vmem:[%s224 + $0x80] sm:$0xff] %v2161
      %2184 = vst [vmem:[%s224 + $0x88] sm:$0xff] %v2164
      %p2185 = scmp.lt.s32.totalorder %s16, 3
      %s2186 = scalar_select %p2185, %s16, 3
      %s2187 = smul.addr %s2186, 18
      %s2188 = smul.addr %s2187, 8
      %s2189 = scalar_lea.vmem %s5, %s2188
      // Predicated region
      $region41: #{fcn_head.1} parent=39 // pred_check
        %p2190 = pneg %p144
      $region42: #{fcn_head.1} parent=39 // pred_check_branch
        %2192 = sbr.rel (%p2190) target = $region44
      $region43: #{fcn_head.1} parent=39 // pred_region
        _
      $region44: #{fcn_head.1} parent=39 // pred_fallthru
        _
    $region40: #{fcn_head.1} parent=5 // pred_fallthru
      _
    %p2193 = scmp.le.s32.totalorder 2, %s11
    // Predicated region
    $region45: #{fcn_head.1} parent=5 // pred_check
      %p2194 = pneg %p2193
    $region46: #{fcn_head.1} parent=5 // pred_check_branch
      %2196 = sbr.rel (%p2194) target = $region48
    $region47: #{fcn_head.1} parent=5 // pred_region
      %s2197 = ssub.s32 %s11, 2
      // Predicated region
      $region49: #{fcn_head.1} parent=47 // pred_check
        %p2198 = pneg %p150
      $region50: #{fcn_head.1} parent=47 // pred_check_branch
        %2200 = sbr.rel (%p2198) target = $region52
      $region51: #{fcn_head.1} parent=47 // pred_region
        %p2201 = scmp.lt.s32.totalorder %s17, 3
        %s2202 = scalar_select %p2201, %s17, 3
        %s2203 = smul.addr %s2202, 18
        %s2204 = smul.addr %s2203, 8
        %s2205 = scalar_lea.vmem %s5, %s2204
      $region52: #{fcn_head.1} parent=47 // pred_fallthru
        _
    $region48: #{fcn_head.1} parent=5 // pred_fallthru
      _
  $region6: #{fcn_head.1} parent=0 // loop_footer
    %s15 = sadd.s32 1, %s11
  $region7: #{fcn_head.1} parent=0 // loop_footer_branch
    %10 = sbr.rel target = $region3
  $region8: #{fcn_head.1} parent=0 // loop_exit
    _

</llo_original>
